<compile_context>
chip_gen: v6e
topology: v6e:2x2x1
jax: 0.10.0
libtpu: 0.0.40
codegen_flags: <defaults>
</compile_context>

<pallas_src>
import functools

import numpy as np
import jax
import jax.numpy as jnp
from jax.experimental import pallas as pl
from jax.experimental.pallas import tpu as pltpu


# ----------------------------------------------------------------------------
# Fused Pallas kernel: GNN cell (x n_layers) + attention readout
# ----------------------------------------------------------------------------
def srgnn_fused_kernel(
    Ain_ref, Aout_ref, h0_ref, Pal_ref, Glast_ref, mask_ref,
    S_ref, ST_ref, WA_ref, WB_ref, bA_ref, bB_ref,
    sh_ref, so_ref,
    *, H, n_layers, Bt, n, L,
):
    # Packed, pre-transposed weights: static ref slices (free views).
    WeinT = WA_ref[0 * H:1 * H, :]
    WeoutT = WA_ref[1 * H:2 * H, :]
    W1T = WA_ref[2 * H:3 * H, :]
    W2T = WA_ref[3 * H:4 * H, :]
    W3T = WA_ref[4 * H:5 * H, :]
    WtaT = WA_ref[5 * H:6 * H, :]
    WtbT = WA_ref[6 * H:7 * H, :]
    WihInT = WB_ref[0 * H:1 * H, :]     # (H, 3H)
    WihOutT = WB_ref[1 * H:2 * H, :]    # (H, 3H)
    WhhT = WB_ref[2 * H:3 * H, :]       # (H, 3H)

    bA = bA_ref[...]                    # (8, H)
    b_ein, b_eout = bA[0:1, :], bA[1:2, :]
    b_iah, b_oah = bA[2:3, :], bA[3:4, :]
    b1, b2, b3, bt = bA[4:5, :], bA[5:6, :], bA[6:7, :], bA[7:8, :]
    bB = bB_ref[...]                    # (2, 3H)
    b_ih, b_hh = bB[0:1, :], bB[1:2, :]

    A_in = Ain_ref[...]                 # (Bt, n, n)
    A_out = Aout_ref[...]               # (Bt, n, n)
    h = h0_ref[...]                     # (Bt*n, H)  sessions stacked on sublanes

    def dot(x, w):
        return jnp.dot(x, w, preferred_element_type=jnp.float32)

    # ---- GNN cell, static unroll over layers ----
    for _ in range(n_layers):
        edge_in = dot(h, WeinT) + b_ein         # (Bt*n, H)
        edge_out = dot(h, WeoutT) + b_eout      # (Bt*n, H)
        input_in = jnp.einsum(
            'bij,bjh->bih', A_in, edge_in.reshape(Bt, n, H),
            preferred_element_type=jnp.float32).reshape(Bt * n, H) + b_iah
        input_out = jnp.einsum(
            'bij,bjh->bih', A_out, edge_out.reshape(Bt, n, H),
            preferred_element_type=jnp.float32).reshape(Bt * n, H) + b_oah
        # Fused gate matmuls (contraction split over the two input halves).
        gi = dot(input_in, WihInT) + dot(input_out, WihOutT) + b_ih   # (Bt*n, 3H)
        gh = dot(h, WhhT) + b_hh                                       # (Bt*n, 3H)
        rg = jax.nn.sigmoid(gi[:, 0:H] + gh[:, 0:H])
        ig = jax.nn.sigmoid(gi[:, H:2 * H] + gh[:, H:2 * H])
        ng = jnp.tanh(gi[:, 2 * H:3 * H] + rg * gh[:, 2 * H:3 * H])
        h = ng + ig * (h - ng)

    # ---- Attention readout (gathers as tiny one-hot matmuls) ----
    sh = dot(Pal_ref[...], h)                   # (Bt*L, H)  == seq_hidden
    sh_ref[...] = sh
    ht = dot(Glast_ref[...], sh)                # (Bt, H)    last valid item
    q1 = dot(ht, W1T) + b1                      # (Bt, H)
    q2 = dot(sh, W2T) + b2                      # (Bt*L, H)
    act = jax.nn.sigmoid(dot(S_ref[...], q1) + q2)        # broadcast q1 over L
    alp = dot(act, W3T) + b3                    # (Bt*L, H)
    a = dot(ST_ref[...], alp * sh * mask_ref[...])        # masked per-session sum
    so_ref[...] = dot(a, WtaT) + dot(ht, WtbT) + bt       # linear_transform


# ----------------------------------------------------------------------------
# Wrapper: packing, batch blocking, pallas_call
# ----------------------------------------------------------------------------
def srgnn_forward(A, items, alias, mask, lengths, p, n_layers, block_b=8):
    B, n = items.shape
    L = alias.shape[1]
    H = p['emb'].shape[1]

    Bt = min(block_b, B)
    G = -(-B // Bt)
    Bp = G * Bt
    pad = Bp - B
    if pad:
        A = jnp.pad(A, ((0, pad), (0, 0), (0, 0)))
        items = jnp.pad(items, ((0, pad), (0, 0)))
        alias = jnp.pad(alias, ((0, pad), (0, 0)))
        mask = jnp.pad(mask, ((0, pad), (0, 0)))
        lengths = jnp.pad(lengths, ((0, pad),), constant_values=1)

    # Host / XLA glue: embedding lookup + one-hot gather operators.
    hidden0 = p['emb'][items]                                  # (Bp, n, H)
    A_in, A_out = A[:, :, :n], A[:, :, n:]
    h0 = hidden0.reshape(G, Bt * n, H)

    eye = jnp.eye(Bt, dtype=jnp.float32)
    P4 = jax.nn.one_hot(alias, n, dtype=jnp.float32).reshape(G, Bt, L, n)
    Pal = jnp.einsum('gblj,bc->gblcj', P4, eye).reshape(G, Bt * L, Bt * n)
    pos = jnp.arange(Bt, dtype=jnp.int32)[None, :] * L + (lengths.reshape(G, Bt) - 1)
    Glast = jax.nn.one_hot(pos, Bt * L, dtype=jnp.float32)     # (G, Bt, Bt*L)
    S = jnp.repeat(eye, L, axis=0)                             # (Bt*L, Bt)
    ST = jnp.repeat(eye, L, axis=1)                            # (Bt, Bt*L)
    mask2 = mask.astype(jnp.float32).reshape(G, Bt * L, 1)

    # Packed, pre-transposed parameters.
    WA = jnp.concatenate([p['W_ein'].T, p['W_eout'].T, p['W1'].T, p['W2'].T,
                          p['W3'].T, p['Wt'][:, :H].T, p['Wt'][:, H:].T],
                         axis=0)                               # (7H, H)
    WB = jnp.concatenate([p['w_ih'][:, :H].T, p['w_ih'][:, H:].T, p['w_hh'].T],
                         axis=0)                               # (3H, 3H)
    bA = jnp.stack([p['b_ein'], p['b_eout'], p['b_iah'], p['b_oah'],
                    p['b1'], p['b2'], p['b3'], p['bt']], axis=0)   # (8, H)
    bB = jnp.stack([p['b_ih'], p['b_hh']], axis=0)                 # (2, 3H)

    kernel = functools.partial(srgnn_fused_kernel,
                               H=H, n_layers=n_layers, Bt=Bt, n=n, L=L)

    sh, so = pl.pallas_call(
        kernel,
        out_shape=(jax.ShapeDtypeStruct((G, Bt * L, H), jnp.float32),
                   jax.ShapeDtypeStruct((G, Bt, H), jnp.float32)),
        grid_spec=pltpu.PrefetchScalarGridSpec(
            num_scalar_prefetch=0,
            grid=(G,),
            in_specs=[
                pl.BlockSpec((Bt, n, n), lambda g: (g, 0, 0)),            # A_in
                pl.BlockSpec((Bt, n, n), lambda g: (g, 0, 0)),            # A_out
                pl.BlockSpec((None, Bt * n, H), lambda g: (g, 0, 0)),     # hidden0
                pl.BlockSpec((None, Bt * L, Bt * n), lambda g: (g, 0, 0)),  # Pal
                pl.BlockSpec((None, Bt, Bt * L), lambda g: (g, 0, 0)),    # Glast
                pl.BlockSpec((None, Bt * L, 1), lambda g: (g, 0, 0)),     # mask
                pl.BlockSpec((Bt * L, Bt), lambda g: (0, 0)),             # S
                pl.BlockSpec((Bt, Bt * L), lambda g: (0, 0)),             # ST
                pl.BlockSpec((7 * H, H), lambda g: (0, 0)),               # WA
                pl.BlockSpec((3 * H, 3 * H), lambda g: (0, 0)),           # WB
                pl.BlockSpec((8, H), lambda g: (0, 0)),                   # bA
                pl.BlockSpec((2, 3 * H), lambda g: (0, 0)),               # bB
            ],
            out_specs=[
                pl.BlockSpec((None, Bt * L, H), lambda g: (g, 0, 0)),     # seq_hidden
                pl.BlockSpec((None, Bt, H), lambda g: (g, 0, 0)),         # seq_output
            ],
        ),
        compiler_params=pltpu.CompilerParams(dimension_semantics=("parallel",)),
    )(A_in, A_out, h0, Pal, Glast, mask2, S, ST, WA, WB, bA, bB)

    seq_hidden = sh.reshape(Bp, L, H)[:B]
    seq_output = so.reshape(Bp, H)[:B]
    return seq_hidden, seq_output


# ----------------------------------------------------------------------------
# Host-side glue: graph construction (SRGNN._get_slice, sequential numpy)
# ----------------------------------------------------------------------------
# TODO(synk): _get_slice is data-dependent sequential preprocessing; kept on host.
def get_slice_np(seqs, n_items):
    mask = (seqs > 0).astype(np.float32)
    B, max_n_nodes = seqs.shape
    alias_inputs, A_list, items_list = [], [], []
    max_alias_len = 0
    for seq in seqs:
        valid_idx = np.where(seq > 0)[0]
        if len(valid_idx) == 0:
            A_list.append(np.zeros((max_n_nodes, 2 * max_n_nodes), dtype=np.float32))
            items_list.append([0] * max_n_nodes)
            alias_inputs.append([0])
            continue
        node = np.unique(seq[valid_idx])
        node = np.clip(node, 0, n_items + 1)
        u_A = np.zeros((max_n_nodes, max_n_nodes), dtype=np.float32)
        for i in range(len(valid_idx) - 1):
            cur_item, nxt_item = seq[valid_idx[i]], seq[valid_idx[i + 1]]
            u_c = np.where(node == cur_item)[0]
            v_c = np.where(node == nxt_item)[0]
            if len(u_c) == 0 or len(v_c) == 0:
                continue
            u_A[u_c[0]][v_c[0]] = 1
        u_sum_in = np.sum(u_A, axis=0)
        u_sum_in[u_sum_in == 0] = 1
        u_A_in = u_A / u_sum_in
        u_sum_out = np.sum(u_A, axis=1)
        u_sum_out[u_sum_out == 0] = 1
        u_A_out = (u_A.T / u_sum_out).T
        u_A_ = np.concatenate([u_A_in, u_A_out], axis=0).T
        items_list.append(list(node) + [0] * (max_n_nodes - len(node)))
        alias = [int(np.where(node == seq[idx_])[0][0]) for idx_ in valid_idx]
        max_alias_len = max(max_alias_len, len(alias))
        A_list.append(u_A_)
        alias_inputs.append(alias)
    for i in range(len(alias_inputs)):
        alias_inputs[i] += [0] * (max_alias_len - len(alias_inputs[i]))
    return (np.array(alias_inputs, dtype=np.int32),
            np.array(A_list, dtype=np.float32),
            np.array(items_list, dtype=np.int32),
            mask)


# ----------------------------------------------------------------------------
# Pure-JAX reference (same math, no Pallas) for verification
# ----------------------------------------------------------------------------
def reference_forward(A, items, alias, mask, lengths, p, n_layers):
    H = p['W1'].shape[0]
    n = items.shape[1]
    hidden = p['emb'][items]
    for _ in range(n_layers):
        Ain, Aout = A[:, :, :n], A[:, :, n:]
        edge_in = hidden @ p['W_ein'].T + p['b_ein']
        edge_out = hidden @ p['W_eout'].T + p['b_eout']
        input_in = jnp.einsum('bnm,bmh->bnh', Ain, edge_in) + p['b_iah']
        input_out = jnp.einsum('bnm,bmh->bnh', Aout, edge_out) + p['b_oah']
        inputs = jnp.concatenate([input_in, input_out], axis=2)
        gi = inputs @ p['w_ih'].T + p['b_ih']
        gh = hidden @ p['w_hh'].T + p['b_hh']
        i_r, i_i, i_n = gi[..., :H], gi[..., H:2 * H], gi[..., 2 * H:]
        h_r, h_i, h_n = gh[..., :H], gh[..., H:2 * H], gh[..., 2 * H:]
        rg = jax.nn.sigmoid(i_r + h_r)
        ig = jax.nn.sigmoid(i_i + h_i)
        ng = jnp.tanh(i_n + rg * h_n)
        hidden = ng + ig * (hidden - ng)
    seq_hidden = jnp.take_along_axis(hidden, alias[..., None], axis=1)
    ht = jnp.take_along_axis(seq_hidden, (lengths - 1)[:, None, None], axis=1)[:, 0, :]
    q1 = (ht @ p['W1'].T + p['b1'])[:, None, :]
    q2 = seq_hidden @ p['W2'].T + p['b2']
    alp = jax.nn.sigmoid(q1 + q2) @ p['W3'].T + p['b3']
    a = jnp.sum(alp * seq_hidden * mask[..., None], axis=1)
    seq_output = jnp.concatenate([a, ht], axis=1) @ p['Wt'].T + p['bt']
    return seq_hidden, seq_output


# ----------------------------------------------------------------------------
# main
# ----------------------------------------------------------------------------
if __name__ == "__main__":
    H = 32          # hidden_size
    N_ITEMS = 20
    N_LAYERS = 1
    B, SEQ = 2, 8

    # deterministic inputs (right-padded sessions; one full-length so alias len == SEQ)
    seqs = np.array([[3, 5, 3, 7, 2, 9, 5, 4],
                     [6, 2, 6, 8, 1, 0, 0, 0]], dtype=np.int64)
    lengths = jnp.array([8, 5], dtype=jnp.int32)

    alias_np, A_np, items_np, mask_np = get_slice_np(seqs, N_ITEMS)
    alias = jnp.asarray(alias_np)
    A = jnp.asarray(A_np)
    items = jnp.asarray(items_np)
    mask = jnp.asarray(mask_np)

    # deterministic parameter init: uniform(-stdv, stdv), stdv = 1/sqrt(H)
    stdv = 1.0 / np.sqrt(H)
    key = jax.random.PRNGKey(0)
    names_shapes = [
        ('emb', (N_ITEMS + 2, H)),
        ('w_ih', (3 * H, 2 * H)), ('w_hh', (3 * H, H)),
        ('b_ih', (3 * H,)), ('b_hh', (3 * H,)),
        ('b_iah', (H,)), ('b_oah', (H,)),
        ('W_ein', (H, H)), ('b_ein', (H,)),
        ('W_eout', (H, H)), ('b_eout', (H,)),
        ('W1', (H, H)), ('b1', (H,)),
        ('W2', (H, H)), ('b2', (H,)),
        ('W3', (H, H)), ('b3', (H,)),
        ('Wt', (H, 2 * H)), ('bt', (H,)),
    ]
    keys = jax.random.split(key, len(names_shapes))
    p = {name: jax.random.uniform(k, shape, jnp.float32, -stdv, stdv)
         for (name, shape), k in zip(names_shapes, keys)}

    # --- forward pass: single fused Pallas call ---
    seq_hidden, seq_output = srgnn_forward(A, items, alias, mask, lengths, p,
                                           n_layers=N_LAYERS, block_b=8)
    seq_hidden = jax.block_until_ready(seq_hidden)
    seq_output = jax.block_until_ready(seq_output)

    # verify against pure-JAX reference
    ref_sh, ref_so = reference_forward(A, items, alias, mask, lengths, p, N_LAYERS)
    np.testing.assert_allclose(np.asarray(seq_hidden), np.asarray(ref_sh),
                               rtol=1e-4, atol=1e-4)
    np.testing.assert_allclose(np.asarray(seq_output), np.asarray(ref_so),
                               rtol=1e-4, atol=1e-4)

    print("KERNEL_OK")
</pallas_src>

<mosaic_0001>
module attributes {stable_mosaic.version = 11 : i64} {
  func.func @srgnn_fused_kernel(%arg0: i32, %arg1: memref<2x8x8xf32, #tpu.memory_space<vmem>>, %arg2: memref<2x8x8xf32, #tpu.memory_space<vmem>>, %arg3: memref<1x16x32xf32, #tpu.memory_space<vmem>>, %arg4: memref<1x16x16xf32, #tpu.memory_space<vmem>>, %arg5: memref<1x2x16xf32, #tpu.memory_space<vmem>>, %arg6: memref<1x16x1xf32, #tpu.memory_space<vmem>>, %arg7: memref<16x2xf32, #tpu.memory_space<vmem>>, %arg8: memref<2x16xf32, #tpu.memory_space<vmem>>, %arg9: memref<224x32xf32, #tpu.memory_space<vmem>>, %arg10: memref<96x96xf32, #tpu.memory_space<vmem>>, %arg11: memref<8x32xf32, #tpu.memory_space<vmem>>, %arg12: memref<2x96xf32, #tpu.memory_space<vmem>>, %arg13: memref<1x16x32xf32, #tpu.memory_space<vmem>>, %arg14: memref<1x2x32xf32, #tpu.memory_space<vmem>>) attributes {dimension_semantics = [#tpu.dimension_semantics<parallel>], iteration_bounds = array<i64: 1>, scalar_prefetch = 0 : i64, scratch_operands = 0 : i64, tpu.core_type = #tpu.core_type<tc>, window_params = [{transform_indices = @transform_0, window_bounds = array<i64: 2, 8, 8>}, {transform_indices = @transform_1, window_bounds = array<i64: 2, 8, 8>}, {transform_indices = @transform_2, window_bounds = array<i64: 1, 16, 32>}, {transform_indices = @transform_3, window_bounds = array<i64: 1, 16, 16>}, {transform_indices = @transform_4, window_bounds = array<i64: 1, 2, 16>}, {transform_indices = @transform_5, window_bounds = array<i64: 1, 16, 1>}, {pipeline_mode = #tpu.pipeline_mode<synchronous>, transform_indices = @transform_6, window_bounds = array<i64: 16, 2>}, {pipeline_mode = #tpu.pipeline_mode<synchronous>, transform_indices = @transform_7, window_bounds = array<i64: 2, 16>}, {pipeline_mode = #tpu.pipeline_mode<synchronous>, transform_indices = @transform_8, window_bounds = array<i64: 224, 32>}, {pipeline_mode = #tpu.pipeline_mode<synchronous>, transform_indices = @transform_9, window_bounds = array<i64: 96, 96>}, {pipeline_mode = #tpu.pipeline_mode<synchronous>, transform_indices = @transform_10, window_bounds = array<i64: 8, 32>}, {pipeline_mode = #tpu.pipeline_mode<synchronous>, transform_indices = @transform_11, window_bounds = array<i64: 2, 96>}, {transform_indices = @transform_12, window_bounds = array<i64: 1, 16, 32>}, {transform_indices = @transform_13, window_bounds = array<i64: 1, 2, 32>}]} {
    %c0 = arith.constant 0 : index
    %c0_0 = arith.constant 0 : index
    %0 = vector.load %arg9[%c0, %c0_0] : memref<224x32xf32, #tpu.memory_space<vmem>>, vector<32x32xf32>
    %c32 = arith.constant 32 : index
    %c0_1 = arith.constant 0 : index
    %1 = vector.load %arg9[%c32, %c0_1] : memref<224x32xf32, #tpu.memory_space<vmem>>, vector<32x32xf32>
    %c64 = arith.constant 64 : index
    %c0_2 = arith.constant 0 : index
    %2 = vector.load %arg9[%c64, %c0_2] : memref<224x32xf32, #tpu.memory_space<vmem>>, vector<32x32xf32>
    %c96 = arith.constant 96 : index
    %c0_3 = arith.constant 0 : index
    %3 = vector.load %arg9[%c96, %c0_3] : memref<224x32xf32, #tpu.memory_space<vmem>>, vector<32x32xf32>
    %c128 = arith.constant 128 : index
    %c0_4 = arith.constant 0 : index
    %4 = vector.load %arg9[%c128, %c0_4] : memref<224x32xf32, #tpu.memory_space<vmem>>, vector<32x32xf32>
    %c160 = arith.constant 160 : index
    %c0_5 = arith.constant 0 : index
    %5 = vector.load %arg9[%c160, %c0_5] : memref<224x32xf32, #tpu.memory_space<vmem>>, vector<32x32xf32>
    %c192 = arith.constant 192 : index
    %c0_6 = arith.constant 0 : index
    %6 = vector.load %arg9[%c192, %c0_6] : memref<224x32xf32, #tpu.memory_space<vmem>>, vector<32x32xf32>
    %c0_7 = arith.constant 0 : index
    %c0_8 = arith.constant 0 : index
    %7 = vector.load %arg10[%c0_7, %c0_8] : memref<96x96xf32, #tpu.memory_space<vmem>>, vector<32x96xf32>
    %c32_9 = arith.constant 32 : index
    %c0_10 = arith.constant 0 : index
    %8 = vector.load %arg10[%c32_9, %c0_10] : memref<96x96xf32, #tpu.memory_space<vmem>>, vector<32x96xf32>
    %c64_11 = arith.constant 64 : index
    %c0_12 = arith.constant 0 : index
    %9 = vector.load %arg10[%c64_11, %c0_12] : memref<96x96xf32, #tpu.memory_space<vmem>>, vector<32x96xf32>
    %c0_13 = arith.constant 0 : index
    %c0_14 = arith.constant 0 : index
    %10 = vector.load %arg11[%c0_13, %c0_14] : memref<8x32xf32, #tpu.memory_space<vmem>>, vector<8x32xf32>
    %11 = vector.extract_strided_slice %10 {offsets = [0, 0], sizes = [1, 32], strides = [1, 1]} : vector<8x32xf32> to vector<1x32xf32>
    %12 = vector.extract_strided_slice %10 {offsets = [1, 0], sizes = [1, 32], strides = [1, 1]} : vector<8x32xf32> to vector<1x32xf32>
    %13 = vector.extract_strided_slice %10 {offsets = [2, 0], sizes = [1, 32], strides = [1, 1]} : vector<8x32xf32> to vector<1x32xf32>
    %14 = vector.extract_strided_slice %10 {offsets = [3, 0], sizes = [1, 32], strides = [1, 1]} : vector<8x32xf32> to vector<1x32xf32>
    %15 = vector.extract_strided_slice %10 {offsets = [4, 0], sizes = [1, 32], strides = [1, 1]} : vector<8x32xf32> to vector<1x32xf32>
    %16 = vector.extract_strided_slice %10 {offsets = [5, 0], sizes = [1, 32], strides = [1, 1]} : vector<8x32xf32> to vector<1x32xf32>
    %17 = vector.extract_strided_slice %10 {offsets = [6, 0], sizes = [1, 32], strides = [1, 1]} : vector<8x32xf32> to vector<1x32xf32>
    %18 = vector.extract_strided_slice %10 {offsets = [7, 0], sizes = [1, 32], strides = [1, 1]} : vector<8x32xf32> to vector<1x32xf32>
    %c0_15 = arith.constant 0 : index
    %c0_16 = arith.constant 0 : index
    %19 = vector.load %arg12[%c0_15, %c0_16] : memref<2x96xf32, #tpu.memory_space<vmem>>, vector<2x96xf32>
    %20 = vector.extract_strided_slice %19 {offsets = [0, 0], sizes = [1, 96], strides = [1, 1]} : vector<2x96xf32> to vector<1x96xf32>
    %21 = vector.extract_strided_slice %19 {offsets = [1, 0], sizes = [1, 96], strides = [1, 1]} : vector<2x96xf32> to vector<1x96xf32>
    %c0_17 = arith.constant 0 : index
    %c0_18 = arith.constant 0 : index
    %c0_19 = arith.constant 0 : index
    %22 = vector.load %arg1[%c0_17, %c0_18, %c0_19] : memref<2x8x8xf32, #tpu.memory_space<vmem>>, vector<2x8x8xf32>
    %c0_20 = arith.constant 0 : index
    %c0_21 = arith.constant 0 : index
    %c0_22 = arith.constant 0 : index
    %23 = vector.load %arg2[%c0_20, %c0_21, %c0_22] : memref<2x8x8xf32, #tpu.memory_space<vmem>>, vector<2x8x8xf32>
    %c0_23 = arith.constant 0 : index
    %c0_24 = arith.constant 0 : index
    %c0_25 = arith.constant 0 : index
    %24 = vector.load %arg3[%c0_23, %c0_24, %c0_25] : memref<1x16x32xf32, #tpu.memory_space<vmem>>, vector<1x16x32xf32>
    %25 = vector.shape_cast %24 : vector<1x16x32xf32> to vector<16x32xf32>
    %cst = arith.constant dense<0.000000e+00> : vector<16x32xf32>
    %26 = tpu.matmul %25, %0, %cst {dimension_numbers = #tpu.dot_dimension_numbers<[1], [0], [0], [1], [0, 0, 1, 1], [], []>} : vector<16x32xf32>, vector<32x32xf32>, vector<16x32xf32> -> vector<16x32xf32>
    %27 = vector.broadcast %11 : vector<1x32xf32> to vector<16x32xf32>
    %28 = arith.addf %26, %27 : vector<16x32xf32>
    %cst_26 = arith.constant dense<0.000000e+00> : vector<16x32xf32>
    %29 = tpu.matmul %25, %1, %cst_26 {dimension_numbers = #tpu.dot_dimension_numbers<[1], [0], [0], [1], [0, 0, 1, 1], [], []>} : vector<16x32xf32>, vector<32x32xf32>, vector<16x32xf32> -> vector<16x32xf32>
    %30 = vector.broadcast %12 : vector<1x32xf32> to vector<16x32xf32>
    %31 = arith.addf %29, %30 : vector<16x32xf32>
    %32 = vector.shape_cast %28 : vector<16x32xf32> to vector<2x8x32xf32>
    "tpu.trace_start"() <{level = 10 : i32, message = "bij,bjh->bih"}> : () -> ()
    %cst_27 = arith.constant dense<0.000000e+00> : vector<2x8x32xf32>
    %33 = tpu.matmul %22, %32, %cst_27 {dimension_numbers = #tpu.dot_dimension_numbers<[2], [1], [1], [2], [0, 0, 0, 1, 1, 2], [0], [0]>} : vector<2x8x8xf32>, vector<2x8x32xf32>, vector<2x8x32xf32> -> vector<2x8x32xf32>
    "tpu.trace_stop"() : () -> ()
    %34 = vector.shape_cast %33 : vector<2x8x32xf32> to vector<16x32xf32>
    %35 = vector.broadcast %13 : vector<1x32xf32> to vector<16x32xf32>
    %36 = arith.addf %34, %35 : vector<16x32xf32>
    %37 = vector.shape_cast %31 : vector<16x32xf32> to vector<2x8x32xf32>
    "tpu.trace_start"() <{level = 10 : i32, message = "bij,bjh->bih"}> : () -> ()
    %cst_28 = arith.constant dense<0.000000e+00> : vector<2x8x32xf32>
    %38 = tpu.matmul %23, %37, %cst_28 {dimension_numbers = #tpu.dot_dimension_numbers<[2], [1], [1], [2], [0, 0, 0, 1, 1, 2], [0], [0]>} : vector<2x8x8xf32>, vector<2x8x32xf32>, vector<2x8x32xf32> -> vector<2x8x32xf32>
    "tpu.trace_stop"() : () -> ()
    %39 = vector.shape_cast %38 : vector<2x8x32xf32> to vector<16x32xf32>
    %40 = vector.broadcast %14 : vector<1x32xf32> to vector<16x32xf32>
    %41 = arith.addf %39, %40 : vector<16x32xf32>
    %cst_29 = arith.constant dense<0.000000e+00> : vector<16x96xf32>
    %42 = tpu.matmul %36, %7, %cst_29 {dimension_numbers = #tpu.dot_dimension_numbers<[1], [0], [0], [1], [0, 0, 1, 1], [], []>} : vector<16x32xf32>, vector<32x96xf32>, vector<16x96xf32> -> vector<16x96xf32>
    %cst_30 = arith.constant dense<0.000000e+00> : vector<16x96xf32>
    %43 = tpu.matmul %41, %8, %cst_30 {dimension_numbers = #tpu.dot_dimension_numbers<[1], [0], [0], [1], [0, 0, 1, 1], [], []>} : vector<16x32xf32>, vector<32x96xf32>, vector<16x96xf32> -> vector<16x96xf32>
    %44 = arith.addf %42, %43 : vector<16x96xf32>
    %45 = vector.broadcast %20 : vector<1x96xf32> to vector<16x96xf32>
    %46 = arith.addf %44, %45 : vector<16x96xf32>
    %cst_31 = arith.constant dense<0.000000e+00> : vector<16x96xf32>
    %47 = tpu.matmul %25, %9, %cst_31 {dimension_numbers = #tpu.dot_dimension_numbers<[1], [0], [0], [1], [0, 0, 1, 1], [], []>} : vector<16x32xf32>, vector<32x96xf32>, vector<16x96xf32> -> vector<16x96xf32>
    %48 = vector.broadcast %21 : vector<1x96xf32> to vector<16x96xf32>
    %49 = arith.addf %47, %48 : vector<16x96xf32>
    %50 = vector.extract_strided_slice %46 {offsets = [0, 0], sizes = [16, 32], strides = [1, 1]} : vector<16x96xf32> to vector<16x32xf32>
    %51 = vector.extract_strided_slice %49 {offsets = [0, 0], sizes = [16, 32], strides = [1, 1]} : vector<16x96xf32> to vector<16x32xf32>
    %52 = arith.addf %50, %51 : vector<16x32xf32>
    %53 = arith.negf %52 : vector<16x32xf32>
    %54 = math.exp %53 : vector<16x32xf32>
    %cst_32 = arith.constant 1.000000e+00 : f32
    %55 = vector.broadcast %cst_32 : f32 to vector<16x32xf32>
    %56 = arith.addf %55, %54 : vector<16x32xf32>
    %57 = arith.divf %55, %56 : vector<16x32xf32>
    %58 = vector.extract_strided_slice %46 {offsets = [0, 32], sizes = [16, 32], strides = [1, 1]} : vector<16x96xf32> to vector<16x32xf32>
    %59 = vector.extract_strided_slice %49 {offsets = [0, 32], sizes = [16, 32], strides = [1, 1]} : vector<16x96xf32> to vector<16x32xf32>
    %60 = arith.addf %58, %59 : vector<16x32xf32>
    %61 = arith.negf %60 : vector<16x32xf32>
    %62 = math.exp %61 : vector<16x32xf32>
    %cst_33 = arith.constant 1.000000e+00 : f32
    %63 = vector.broadcast %cst_33 : f32 to vector<16x32xf32>
    %64 = arith.addf %63, %62 : vector<16x32xf32>
    %65 = arith.divf %63, %64 : vector<16x32xf32>
    %66 = vector.extract_strided_slice %46 {offsets = [0, 64], sizes = [16, 32], strides = [1, 1]} : vector<16x96xf32> to vector<16x32xf32>
    %67 = vector.extract_strided_slice %49 {offsets = [0, 64], sizes = [16, 32], strides = [1, 1]} : vector<16x96xf32> to vector<16x32xf32>
    %68 = arith.mulf %57, %67 : vector<16x32xf32>
    %69 = arith.addf %66, %68 : vector<16x32xf32>
    %70 = math.tanh %69 : vector<16x32xf32>
    %71 = arith.subf %25, %70 : vector<16x32xf32>
    %72 = arith.mulf %65, %71 : vector<16x32xf32>
    %73 = arith.addf %70, %72 : vector<16x32xf32>
    %c0_34 = arith.constant 0 : index
    %c0_35 = arith.constant 0 : index
    %c0_36 = arith.constant 0 : index
    %74 = vector.load %arg4[%c0_34, %c0_35, %c0_36] : memref<1x16x16xf32, #tpu.memory_space<vmem>>, vector<1x16x16xf32>
    %75 = vector.shape_cast %74 : vector<1x16x16xf32> to vector<16x16xf32>
    %cst_37 = arith.constant dense<0.000000e+00> : vector<16x32xf32>
    %76 = tpu.matmul %75, %73, %cst_37 {dimension_numbers = #tpu.dot_dimension_numbers<[1], [0], [0], [1], [0, 0, 1, 1], [], []>} : vector<16x16xf32>, vector<16x32xf32>, vector<16x32xf32> -> vector<16x32xf32>
    %c0_38 = arith.constant 0 : index
    %c0_39 = arith.constant 0 : index
    %c0_40 = arith.constant 0 : index
    %77 = vector.load %arg13[%c0_38, %c0_39, %c0_40] : memref<1x16x32xf32, #tpu.memory_space<vmem>>, vector<1x16x32xf32>
    %78 = vector.shape_cast %77 : vector<1x16x32xf32> to vector<16x32xf32>
    %79 = vector.shape_cast %76 : vector<16x32xf32> to vector<1x16x32xf32>
    tpu.vector_store %arg13[%c0_38, %c0_39, %c0_40], %79 {strides = array<i32>} : memref<1x16x32xf32, #tpu.memory_space<vmem>>, vector<1x16x32xf32>,
    %c0_41 = arith.constant 0 : index
    %c0_42 = arith.constant 0 : index
    %c0_43 = arith.constant 0 : index
    %80 = vector.load %arg5[%c0_41, %c0_42, %c0_43] : memref<1x2x16xf32, #tpu.memory_space<vmem>>, vector<1x2x16xf32>
    %81 = vector.shape_cast %80 : vector<1x2x16xf32> to vector<2x16xf32>
    %cst_44 = arith.constant dense<0.000000e+00> : vector<2x32xf32>
    %82 = tpu.matmul %81, %76, %cst_44 {dimension_numbers = #tpu.dot_dimension_numbers<[1], [0], [0], [1], [0, 0, 1, 1], [], []>} : vector<2x16xf32>, vector<16x32xf32>, vector<2x32xf32> -> vector<2x32xf32>
    %cst_45 = arith.constant dense<0.000000e+00> : vector<2x32xf32>
    %83 = tpu.matmul %82, %2, %cst_45 {dimension_numbers = #tpu.dot_dimension_numbers<[1], [0], [0], [1], [0, 0, 1, 1], [], []>} : vector<2x32xf32>, vector<32x32xf32>, vector<2x32xf32> -> vector<2x32xf32>
    %84 = vector.broadcast %15 : vector<1x32xf32> to vector<2x32xf32>
    %85 = arith.addf %83, %84 : vector<2x32xf32>
    %cst_46 = arith.constant dense<0.000000e+00> : vector<16x32xf32>
    %86 = tpu.matmul %76, %3, %cst_46 {dimension_numbers = #tpu.dot_dimension_numbers<[1], [0], [0], [1], [0, 0, 1, 1], [], []>} : vector<16x32xf32>, vector<32x32xf32>, vector<16x32xf32> -> vector<16x32xf32>
    %87 = vector.broadcast %16 : vector<1x32xf32> to vector<16x32xf32>
    %88 = arith.addf %86, %87 : vector<16x32xf32>
    %c0_47 = arith.constant 0 : index
    %c0_48 = arith.constant 0 : index
    %89 = vector.load %arg7[%c0_47, %c0_48] : memref<16x2xf32, #tpu.memory_space<vmem>>, vector<16x2xf32>
    %cst_49 = arith.constant dense<0.000000e+00> : vector<16x32xf32>
    %90 = tpu.matmul %89, %85, %cst_49 {dimension_numbers = #tpu.dot_dimension_numbers<[1], [0], [0], [1], [0, 0, 1, 1], [], []>} : vector<16x2xf32>, vector<2x32xf32>, vector<16x32xf32> -> vector<16x32xf32>
    %91 = arith.addf %90, %88 : vector<16x32xf32>
    %92 = arith.negf %91 : vector<16x32xf32>
    %93 = math.exp %92 : vector<16x32xf32>
    %cst_50 = arith.constant 1.000000e+00 : f32
    %94 = vector.broadcast %cst_50 : f32 to vector<16x32xf32>
    %95 = arith.addf %94, %93 : vector<16x32xf32>
    %96 = arith.divf %94, %95 : vector<16x32xf32>
    %cst_51 = arith.constant dense<0.000000e+00> : vector<16x32xf32>
    %97 = tpu.matmul %96, %4, %cst_51 {dimension_numbers = #tpu.dot_dimension_numbers<[1], [0], [0], [1], [0, 0, 1, 1], [], []>} : vector<16x32xf32>, vector<32x32xf32>, vector<16x32xf32> -> vector<16x32xf32>
    %98 = vector.broadcast %17 : vector<1x32xf32> to vector<16x32xf32>
    %99 = arith.addf %97, %98 : vector<16x32xf32>
    %c0_52 = arith.constant 0 : index
    %c0_53 = arith.constant 0 : index
    %100 = vector.load %arg8[%c0_52, %c0_53] : memref<2x16xf32, #tpu.memory_space<vmem>>, vector<2x16xf32>
    %101 = arith.mulf %99, %76 : vector<16x32xf32>
    %c0_54 = arith.constant 0 : index
    %c0_55 = arith.constant 0 : index
    %c0_56 = arith.constant 0 : index
    %102 = vector.load %arg6[%c0_54, %c0_55, %c0_56] : memref<1x16x1xf32, #tpu.memory_space<vmem>>, vector<1x16x1xf32>
    %103 = vector.shape_cast %102 : vector<1x16x1xf32> to vector<16x1xf32>
    %104 = vector.broadcast %103 : vector<16x1xf32> to vector<16x32xf32>
    %105 = arith.mulf %101, %104 : vector<16x32xf32>
    %cst_57 = arith.constant dense<0.000000e+00> : vector<2x32xf32>
    %106 = tpu.matmul %100, %105, %cst_57 {dimension_numbers = #tpu.dot_dimension_numbers<[1], [0], [0], [1], [0, 0, 1, 1], [], []>} : vector<2x16xf32>, vector<16x32xf32>, vector<2x32xf32> -> vector<2x32xf32>
    %cst_58 = arith.constant dense<0.000000e+00> : vector<2x32xf32>
    %107 = tpu.matmul %106, %5, %cst_58 {dimension_numbers = #tpu.dot_dimension_numbers<[1], [0], [0], [1], [0, 0, 1, 1], [], []>} : vector<2x32xf32>, vector<32x32xf32>, vector<2x32xf32> -> vector<2x32xf32>
    %cst_59 = arith.constant dense<0.000000e+00> : vector<2x32xf32>
    %108 = tpu.matmul %82, %6, %cst_59 {dimension_numbers = #tpu.dot_dimension_numbers<[1], [0], [0], [1], [0, 0, 1, 1], [], []>} : vector<2x32xf32>, vector<32x32xf32>, vector<2x32xf32> -> vector<2x32xf32>
    %109 = arith.addf %107, %108 : vector<2x32xf32>
    %110 = vector.broadcast %18 : vector<1x32xf32> to vector<2x32xf32>
    %111 = arith.addf %109, %110 : vector<2x32xf32>
    %c0_60 = arith.constant 0 : index
    %c0_61 = arith.constant 0 : index
    %c0_62 = arith.constant 0 : index
    %112 = vector.load %arg14[%c0_60, %c0_61, %c0_62] : memref<1x2x32xf32, #tpu.memory_space<vmem>>, vector<1x2x32xf32>
    %113 = vector.shape_cast %112 : vector<1x2x32xf32> to vector<2x32xf32>
    %114 = vector.shape_cast %111 : vector<2x32xf32> to vector<1x2x32xf32>
    tpu.vector_store %arg14[%c0_60, %c0_61, %c0_62], %114 {strides = array<i32>} : memref<1x2x32xf32, #tpu.memory_space<vmem>>, vector<1x2x32xf32>,
    return
  }
  func.func @transform_0(%arg0: i32) -> (i32, i32, i32) {
    %c0_i32 = arith.constant 0 : i32
    %c0_i32_0 = arith.constant 0 : i32
    %c0_i32_1 = arith.constant 0 : i32
    return %arg0, %c0_i32, %c0_i32_0 : i32, i32, i32
  }
  func.func @transform_1(%arg0: i32) -> (i32, i32, i32) {
    %c0_i32 = arith.constant 0 : i32
    %c0_i32_0 = arith.constant 0 : i32
    %c0_i32_1 = arith.constant 0 : i32
    return %arg0, %c0_i32, %c0_i32_0 : i32, i32, i32
  }
  func.func @transform_2(%arg0: i32) -> (i32, i32, i32) {
    %c0_i32 = arith.constant 0 : i32
    %c0_i32_0 = arith.constant 0 : i32
    %c0_i32_1 = arith.constant 0 : i32
    return %arg0, %c0_i32, %c0_i32_0 : i32, i32, i32
  }
  func.func @transform_3(%arg0: i32) -> (i32, i32, i32) {
    %c0_i32 = arith.constant 0 : i32
    %c0_i32_0 = arith.constant 0 : i32
    %c0_i32_1 = arith.constant 0 : i32
    return %arg0, %c0_i32, %c0_i32_0 : i32, i32, i32
  }
  func.func @transform_4(%arg0: i32) -> (i32, i32, i32) {
    %c0_i32 = arith.constant 0 : i32
    %c0_i32_0 = arith.constant 0 : i32
    %c0_i32_1 = arith.constant 0 : i32
    return %arg0, %c0_i32, %c0_i32_0 : i32, i32, i32
  }
  func.func @transform_5(%arg0: i32) -> (i32, i32, i32) {
    %c0_i32 = arith.constant 0 : i32
    %c0_i32_0 = arith.constant 0 : i32
    %c0_i32_1 = arith.constant 0 : i32
    return %arg0, %c0_i32, %c0_i32_0 : i32, i32, i32
  }
  func.func @transform_6(%arg0: i32) -> (i32, i32) {
    %c0_i32 = arith.constant 0 : i32
    %c0_i32_0 = arith.constant 0 : i32
    %c0_i32_1 = arith.constant 0 : i32
    return %c0_i32, %c0_i32_0 : i32, i32
  }
  func.func @transform_7(%arg0: i32) -> (i32, i32) {
    %c0_i32 = arith.constant 0 : i32
    %c0_i32_0 = arith.constant 0 : i32
    %c0_i32_1 = arith.constant 0 : i32
    return %c0_i32, %c0_i32_0 : i32, i32
  }
  func.func @transform_8(%arg0: i32) -> (i32, i32) {
    %c0_i32 = arith.constant 0 : i32
    %c0_i32_0 = arith.constant 0 : i32
    %c0_i32_1 = arith.constant 0 : i32
    return %c0_i32, %c0_i32_0 : i32, i32
  }
  func.func @transform_9(%arg0: i32) -> (i32, i32) {
    %c0_i32 = arith.constant 0 : i32
    %c0_i32_0 = arith.constant 0 : i32
    %c0_i32_1 = arith.constant 0 : i32
    return %c0_i32, %c0_i32_0 : i32, i32
  }
  func.func @transform_10(%arg0: i32) -> (i32, i32) {
    %c0_i32 = arith.constant 0 : i32
    %c0_i32_0 = arith.constant 0 : i32
    %c0_i32_1 = arith.constant 0 : i32
    return %c0_i32, %c0_i32_0 : i32, i32
  }
  func.func @transform_11(%arg0: i32) -> (i32, i32) {
    %c0_i32 = arith.constant 0 : i32
    %c0_i32_0 = arith.constant 0 : i32
    %c0_i32_1 = arith.constant 0 : i32
    return %c0_i32, %c0_i32_0 : i32, i32
  }
  func.func @transform_12(%arg0: i32) -> (i32, i32, i32) {
    %c0_i32 = arith.constant 0 : i32
    %c0_i32_0 = arith.constant 0 : i32
    %c0_i32_1 = arith.constant 0 : i32
    return %arg0, %c0_i32, %c0_i32_0 : i32, i32, i32
  }
  func.func @transform_13(%arg0: i32) -> (i32, i32, i32) {
    %c0_i32 = arith.constant 0 : i32
    %c0_i32_0 = arith.constant 0 : i32
    %c0_i32_1 = arith.constant 0 : i32
    return %arg0, %c0_i32, %c0_i32_0 : i32, i32, i32
  }
}

</mosaic_0001>

<llo_original>
// kernel: tpu_custom_call.1
$region0: #{tpu_custom_call.1}
  #allocation0 [shape = 'u32[]', space=smem, size = 0x4, offset = 0x4, fixed_abs, tag = 'smem constant byte address 0x4 - core index']
  #allocation1 [shape = 'u32[144,128]{1,0:T(1,128)}', space=vmem, size = 0x12000, scoped, tag = 'internal scratch']
  %s0 = inlined_call_operand.vmem [shape: f32[2,8,8], index: 0, kind: input, shape index: {}]
  %s1 = inlined_call_operand.vmem [shape: f32[2,8,8], index: 1, kind: input, shape index: {}]
  %s2 = inlined_call_operand.vmem [shape: f32[1,16,32], index: 2, kind: input, shape index: {}]
  %s3 = inlined_call_operand.vmem [shape: f32[1,16,16], index: 3, kind: input, shape index: {}]
  %s4 = inlined_call_operand.vmem [shape: f32[1,2,16], index: 4, kind: input, shape index: {}]
  %s5 = inlined_call_operand.vmem [shape: f32[1,16,1], index: 5, kind: input, shape index: {}]
  %s6 = inlined_call_operand.vmem [shape: f32[16,2], index: 6, kind: input, shape index: {}]
  %s7 = inlined_call_operand.vmem [shape: f32[2,16], index: 7, kind: input, shape index: {}]
  %s8 = inlined_call_operand.vmem [shape: f32[224,32], index: 8, kind: input, shape index: {}]
  %s9 = inlined_call_operand.vmem [shape: f32[96,96], index: 9, kind: input, shape index: {}]
  %s10 = inlined_call_operand.vmem [shape: f32[8,32], index: 10, kind: input, shape index: {}]
  %s11 = inlined_call_operand.vmem [shape: f32[2,96], index: 11, kind: input, shape index: {}]
  %s12 = inlined_call_operand.hbm [shape: f32[1,16,32], index: 12, kind: output, shape index: {0}]
  %s13 = inlined_call_operand.hbm [shape: f32[1,2,32], index: 13, kind: output, shape index: {1}]
  %14 = xla_tuple %s12, %s13
  %s15 = sld [smem:[#allocation0]]
  $region66: #{tpu_custom_call.1} parent=0
    _
  %s17 = ssub.s32 1, %s15
  %s18 = scalar_select 0, %s17, %s15
  $region1: #{tpu_custom_call.1} parent=0
    #allocation2 [shape = 'u8[8192]{0}', space=vmem, size = 0x2000, scoped, tag = 'output window, operand 0, single buffered']
    #allocation3 [shape = 's32[1]{0}', space=sflag, size = 0x4, scoped, tag = 'scoped memory for tpu_custom_call.1']
    #allocation4 [shape = 'u8[1024]{0}', space=vmem, size = 0x400, scoped, tag = 'output window, operand 1, single buffered']
    #allocation5 [shape = 's32[1]{0}', space=sflag, size = 0x4, scoped, tag = 'scoped memory for tpu_custom_call.1']
    %19 = vsyncpa [#allocation3], 0
    %20 = vsyncpa [#allocation5], 0
    // Predicated region
    $region2: #{tpu_custom_call.1} parent=1 // pred_check
      _
    $region3: #{tpu_custom_call.1} parent=1 // pred_check_branch
      %22 = sbr.rel (0) target = $region5
    $region4: #{tpu_custom_call.1} parent=1 // pred_region
      _
    $region5: #{tpu_custom_call.1} parent=1 // pred_fallthru
      _
    // Predicated region
    $region6: #{tpu_custom_call.1} parent=1 // pred_check
      _
    $region7: #{tpu_custom_call.1} parent=1 // pred_check_branch
      %24 = sbr.rel (0) target = $region9
    $region8: #{tpu_custom_call.1} parent=1 // pred_region
      _
    $region9: #{tpu_custom_call.1} parent=1 // pred_fallthru
      _
    // Predicated region
    $region10: #{tpu_custom_call.1} parent=1 // pred_check
      _
    $region11: #{tpu_custom_call.1} parent=1 // pred_check_branch
      %26 = sbr.rel (0) target = $region13
    $region12: #{tpu_custom_call.1} parent=1 // pred_region
      _
    $region13: #{tpu_custom_call.1} parent=1 // pred_fallthru
      _
    // Predicated region
    $region14: #{tpu_custom_call.1} parent=1 // pred_check
      _
    $region15: #{tpu_custom_call.1} parent=1 // pred_check_branch
      %28 = sbr.rel (0) target = $region17
    $region16: #{tpu_custom_call.1} parent=1 // pred_region
      _
    $region17: #{tpu_custom_call.1} parent=1 // pred_fallthru
      _
    // Predicated region
    $region18: #{tpu_custom_call.1} parent=1 // pred_check
      _
    $region19: #{tpu_custom_call.1} parent=1 // pred_check_branch
      %30 = sbr.rel (0) target = $region21
    $region20: #{tpu_custom_call.1} parent=1 // pred_region
      _
    $region21: #{tpu_custom_call.1} parent=1 // pred_fallthru
      _
    // Predicated region
    $region22: #{tpu_custom_call.1} parent=1 // pred_check
      _
    $region23: #{tpu_custom_call.1} parent=1 // pred_check_branch
      %32 = sbr.rel (0) target = $region25
    $region24: #{tpu_custom_call.1} parent=1 // pred_region
      _
    $region25: #{tpu_custom_call.1} parent=1 // pred_fallthru
      _
    // Predicated region
    $region26: #{tpu_custom_call.1} parent=1 // pred_check
      _
    $region27: #{tpu_custom_call.1} parent=1 // pred_check_branch
      %34 = sbr.rel (0) target = $region29
    $region28: #{tpu_custom_call.1} parent=1 // pred_region
      _
    $region29: #{tpu_custom_call.1} parent=1 // pred_fallthru
      _
    // Predicated region
    $region30: #{tpu_custom_call.1} parent=1 // pred_check
      _
    $region31: #{tpu_custom_call.1} parent=1 // pred_check_branch
      %36 = sbr.rel (0) target = $region33
    $region32: #{tpu_custom_call.1} parent=1 // pred_region
      _
    $region33: #{tpu_custom_call.1} parent=1 // pred_fallthru
      _
    // Predicated region
    $region34: #{tpu_custom_call.1} parent=1 // pred_check
      _
    $region35: #{tpu_custom_call.1} parent=1 // pred_check_branch
      %38 = sbr.rel (0) target = $region37
    $region36: #{tpu_custom_call.1} parent=1 // pred_region
      _
    $region37: #{tpu_custom_call.1} parent=1 // pred_fallthru
      _
    // Predicated region
    $region38: #{tpu_custom_call.1} parent=1 // pred_check
      _
    $region39: #{tpu_custom_call.1} parent=1 // pred_check_branch
      %40 = sbr.rel (0) target = $region41
    $region40: #{tpu_custom_call.1} parent=1 // pred_region
      _
    $region41: #{tpu_custom_call.1} parent=1 // pred_fallthru
      _
    // Predicated region
    $region42: #{tpu_custom_call.1} parent=1 // pred_check
      _
    $region43: #{tpu_custom_call.1} parent=1 // pred_check_branch
      %42 = sbr.rel (0) target = $region45
    $region44: #{tpu_custom_call.1} parent=1 // pred_region
      _
    $region45: #{tpu_custom_call.1} parent=1 // pred_fallthru
      _
    // Predicated region
    $region46: #{tpu_custom_call.1} parent=1 // pred_check
      _
    $region47: #{tpu_custom_call.1} parent=1 // pred_check_branch
      %44 = sbr.rel (0) target = $region49
    $region48: #{tpu_custom_call.1} parent=1 // pred_region
      _
    $region49: #{tpu_custom_call.1} parent=1 // pred_fallthru
      _
    %v45 = vld [vmem:[%s8] sm:$0xff]
    %v46 = vld [vmem:[%s8 + $0x8] sm:$0xff]
    %v47 = vld [vmem:[%s8 + $0x10] sm:$0xff]
    %v48 = vld [vmem:[%s8 + $0x18] sm:$0xff]
    %v49 = vld [vmem:[%s8 + $0x20] sm:$0xff]
    %v50 = vld [vmem:[%s8 + $0x28] sm:$0xff]
    %v51 = vld [vmem:[%s8 + $0x30] sm:$0xff]
    %v52 = vld [vmem:[%s8 + $0x38] sm:$0xff]
    %v53 = vld [vmem:[%s8 + $0x40] sm:$0xff]
    %v54 = vld [vmem:[%s8 + $0x48] sm:$0xff]
    %v55 = vld [vmem:[%s8 + $0x50] sm:$0xff]
    %v56 = vld [vmem:[%s8 + $0x58] sm:$0xff]
    %v57 = vld [vmem:[%s8 + $0x60] sm:$0xff]
    %v58 = vld [vmem:[%s8 + $0x68] sm:$0xff]
    %v59 = vld [vmem:[%s8 + $0x70] sm:$0xff]
    %v60 = vld [vmem:[%s8 + $0x78] sm:$0xff]
    %v61 = vld [vmem:[%s8 + $0x80] sm:$0xff]
    %v62 = vld [vmem:[%s8 + $0x88] sm:$0xff]
    %v63 = vld [vmem:[%s8 + $0x90] sm:$0xff]
    %v64 = vld [vmem:[%s8 + $0x98] sm:$0xff]
    %v65 = vld [vmem:[%s8 + $0xa0] sm:$0xff]
    %v66 = vld [vmem:[%s8 + $0xa8] sm:$0xff]
    %v67 = vld [vmem:[%s8 + $0xb0] sm:$0xff]
    %v68 = vld [vmem:[%s8 + $0xb8] sm:$0xff]
    %v69 = vld [vmem:[%s8 + $0xc0] sm:$0xff]
    %v70 = vld [vmem:[%s8 + $0xc8] sm:$0xff]
    %v71 = vld [vmem:[%s8 + $0xd0] sm:$0xff]
    %v72 = vld [vmem:[%s8 + $0xd8] sm:$0xff]
    %v73 = vld [vmem:[%s9] sm:$0xff]
    %v74 = vld [vmem:[%s9 + $0x8] sm:$0xff]
    %v75 = vld [vmem:[%s9 + $0x10] sm:$0xff]
    %v76 = vld [vmem:[%s9 + $0x18] sm:$0xff]
    %v77 = vld [vmem:[%s9 + $0x20] sm:$0xff]
    %v78 = vld [vmem:[%s9 + $0x28] sm:$0xff]
    %v79 = vld [vmem:[%s9 + $0x30] sm:$0xff]
    %v80 = vld [vmem:[%s9 + $0x38] sm:$0xff]
    %v81 = vld [vmem:[%s9 + $0x40] sm:$0xff]
    %v82 = vld [vmem:[%s9 + $0x48] sm:$0xff]
    %v83 = vld [vmem:[%s9 + $0x50] sm:$0xff]
    %v84 = vld [vmem:[%s9 + $0x58] sm:$0xff]
    %v85 = vld [vmem:[%s10] sm:$0xff]
    %v86 = vld [vmem:[%s11] sm:$0x3]
    %v87 = vld [vmem:[%s0] sm:$0xff]
    %v88 = vld [vmem:[%s0 + $0x8] sm:$0xff]
    %v89 = vld [vmem:[%s1] sm:$0xff]
    %v90 = vld [vmem:[%s1 + $0x8] sm:$0xff]
    %v91 = vld [vmem:[%s2] sm:$0xff]
    %v92 = vld [vmem:[%s2 + $0x8] sm:$0xff]
    %v93 = vlaneseq
    %v94 = vshrl.u32 %v93, 7
    %v95 = vsub.s32 0, %v94
    %v96 = vrot.slane %v85, %v95
    %vm97 = vcmask 261120
    %v99 = vsel %vm97, %v91, 0
    %v102 = vsel %vm97, %v92, 0
    %104 = vmatprep.subr.mxu0 0.0
    %105 = vmatpush1.msra.mxu0 0.0
    %106 = vmatprep.subr.mxu0 0.0
    %107 = vmatpush1.msra.mxu0 0.0
    %108 = vmatprep.subr.mxu0 0.0
    %109 = vmatpush1.msra.mxu0 0.0
    %110 = vmatprep.subr.mxu0 0.0
    %111 = vmatpush1.msra.mxu0 0.0
    %112 = vmatprep.subr.mxu0 0.0
    %113 = vmatpush1.msra.mxu0 0.0
    %114 = vmatprep.subr.mxu0 0.0
    %115 = vmatpush1.msra.mxu0 0.0
    %116 = vmatprep.subr.mxu0 0.0
    %117 = vmatpush1.msra.mxu0 0.0
    %118 = vmatprep.subr.mxu0 0.0
    %119 = vmatpush1.msra.mxu0 0.0
    %120 = vmatprep.subr.mxu0 0.0
    %121 = vmatpush1.msra.mxu0 0.0
    %122 = vmatprep.subr.mxu0 0.0
    %123 = vmatpush1.msra.mxu0 0.0
    %124 = vmatprep.subr.mxu0 0.0
    %125 = vmatpush1.msra.mxu0 0.0
    %126 = vmatprep.subr.mxu0 0.0
    %127 = vmatpush1.msra.mxu0 0.0
    %128 = vmatprep.subr.mxu0 0.0
    %129 = vmatpush1.msra.mxu0 %v48
    %130 = vmatprep.subr.mxu0 0.0
    %131 = vmatpush1.msra.mxu0 %v47
    %132 = vmatprep.subr.mxu0 0.0
    %133 = vmatpush1.msra.mxu0 %v46
    %134 = vmatprep.subr.mxu0 0.0
    %135 = vmatpush1.msra.mxu0 %v45
    %136 = vmatprep.subr.mxu0 0.0
    %137 = vmatpush2.msra.mxu0 0.0
    %138 = vmatprep.subr.mxu0 0.0
    %139 = vmatpush2.msra.mxu0 0.0
    %140 = vmatprep.subr.mxu0 0.0
    %141 = vmatpush2.msra.mxu0 0.0
    %142 = vmatprep.subr.mxu0 0.0
    %143 = vmatpush2.msra.mxu0 0.0
    %144 = vmatprep.subr.mxu0 0.0
    %145 = vmatpush2.msra.mxu0 0.0
    %146 = vmatprep.subr.mxu0 0.0
    %147 = vmatpush2.msra.mxu0 0.0
    %148 = vmatprep.subr.mxu0 0.0
    %149 = vmatpush2.msra.mxu0 0.0
    %150 = vmatprep.subr.mxu0 0.0
    %151 = vmatpush2.msra.mxu0 0.0
    %152 = vmatprep.subr.mxu0 0.0
    %153 = vmatpush2.msra.mxu0 0.0
    %154 = vmatprep.subr.mxu0 0.0
    %155 = vmatpush2.msra.mxu0 0.0
    %156 = vmatprep.subr.mxu0 0.0
    %157 = vmatpush2.msra.mxu0 0.0
    %158 = vmatprep.subr.mxu0 0.0
    %159 = vmatpush2.msra.mxu0 0.0
    %160 = vmatprep.subr.mxu0 0.0
    %161 = vmatpush2.msra.mxu0 0.0
    %162 = vmatprep.subr.mxu0 0.0
    %163 = vmatpush2.msra.mxu0 0.0
    %164 = vmatprep.subr.mxu0 0.0
    %165 = vmatpush2.msra.mxu0 0.0
    %166 = vmatprep.subr.mxu0 0.0
    %167 = vmatpush2.msra.mxu0 0.0
    %168 = vmatprep.mubr.f32.mxu0 0.0
    %169 = vmatmul.mubr.f32.gmra.mxu0 %v99
    %v170 = vpop.f32.mrf.mxu0
    %v171 = vadd.f32 %v96, %v170
    %v172 = vpop.f32.mrf.mxu0
    %173 = vmatprep.mubr.f32.mxu0 0.0
    %174 = vmatmul.mubr.f32.gmra.mxu0 %v102
    %v175 = vpop.f32.mrf.mxu0
    %v176 = vadd.f32 %v96, %v175
    %v177 = vpop.f32.mrf.mxu0
    %178 = vdwg.mxu0
    %v179 = vlaneseq
    %v180 = vshrl.u32 %v179, 7
    %v181 = vsub.s32 1, %v180
    %v182 = vrot.slane %v85, %v181
    %183 = vmatprep.subr.mxu0 0.0
    %184 = vmatpush1.msra.mxu0 0.0
    %185 = vmatprep.subr.mxu0 0.0
    %186 = vmatpush1.msra.mxu0 0.0
    %187 = vmatprep.subr.mxu0 0.0
    %188 = vmatpush1.msra.mxu0 0.0
    %189 = vmatprep.subr.mxu0 0.0
    %190 = vmatpush1.msra.mxu0 0.0
    %191 = vmatprep.subr.mxu0 0.0
    %192 = vmatpush1.msra.mxu0 0.0
    %193 = vmatprep.subr.mxu0 0.0
    %194 = vmatpush1.msra.mxu0 0.0
    %195 = vmatprep.subr.mxu0 0.0
    %196 = vmatpush1.msra.mxu0 0.0
    %197 = vmatprep.subr.mxu0 0.0
    %198 = vmatpush1.msra.mxu0 0.0
    %199 = vmatprep.subr.mxu0 0.0
    %200 = vmatpush1.msra.mxu0 0.0
    %201 = vmatprep.subr.mxu0 0.0
    %202 = vmatpush1.msra.mxu0 0.0
    %203 = vmatprep.subr.mxu0 0.0
    %204 = vmatpush1.msra.mxu0 0.0
    %205 = vmatprep.subr.mxu0 0.0
    %206 = vmatpush1.msra.mxu0 0.0
    %207 = vmatprep.subr.mxu0 0.0
    %208 = vmatpush1.msra.mxu0 %v52
    %209 = vmatprep.subr.mxu0 0.0
    %210 = vmatpush1.msra.mxu0 %v51
    %211 = vmatprep.subr.mxu0 0.0
    %212 = vmatpush1.msra.mxu0 %v50
    %213 = vmatprep.subr.mxu0 0.0
    %214 = vmatpush1.msra.mxu0 %v49
    %215 = vmatprep.subr.mxu0 0.0
    %216 = vmatpush2.msra.mxu0 0.0
    %217 = vmatprep.subr.mxu0 0.0
    %218 = vmatpush2.msra.mxu0 0.0
    %219 = vmatprep.subr.mxu0 0.0
    %220 = vmatpush2.msra.mxu0 0.0
    %221 = vmatprep.subr.mxu0 0.0
    %222 = vmatpush2.msra.mxu0 0.0
    %223 = vmatprep.subr.mxu0 0.0
    %224 = vmatpush2.msra.mxu0 0.0
    %225 = vmatprep.subr.mxu0 0.0
    %226 = vmatpush2.msra.mxu0 0.0
    %227 = vmatprep.subr.mxu0 0.0
    %228 = vmatpush2.msra.mxu0 0.0
    %229 = vmatprep.subr.mxu0 0.0
    %230 = vmatpush2.msra.mxu0 0.0
    %231 = vmatprep.subr.mxu0 0.0
    %232 = vmatpush2.msra.mxu0 0.0
    %233 = vmatprep.subr.mxu0 0.0
    %234 = vmatpush2.msra.mxu0 0.0
    %235 = vmatprep.subr.mxu0 0.0
    %236 = vmatpush2.msra.mxu0 0.0
    %237 = vmatprep.subr.mxu0 0.0
    %238 = vmatpush2.msra.mxu0 0.0
    %239 = vmatprep.subr.mxu0 0.0
    %240 = vmatpush2.msra.mxu0 0.0
    %241 = vmatprep.subr.mxu0 0.0
    %242 = vmatpush2.msra.mxu0 0.0
    %243 = vmatprep.subr.mxu0 0.0
    %244 = vmatpush2.msra.mxu0 0.0
    %245 = vmatprep.subr.mxu0 0.0
    %246 = vmatpush2.msra.mxu0 0.0
    %247 = vmatprep.mubr.f32.mxu0 0.0
    %248 = vmatmul.mubr.f32.gmra.mxu0 %v99
    %v249 = vpop.f32.mrf.mxu0
    %v250 = vadd.f32 %v182, %v249
    %v251 = vpop.f32.mrf.mxu0
    %252 = vmatprep.mubr.f32.mxu0 0.0
    %253 = vmatmul.mubr.f32.gmra.mxu0 %v102
    %v254 = vpop.f32.mrf.mxu0
    %v255 = vadd.f32 %v182, %v254
    %v256 = vpop.f32.mrf.mxu0
    %257 = vdwg.mxu0
    %vm258 = vcmask 64512
    %v260 = vsel %vm258, %v87, 0
    %262 = vmatprep.subr.mxu0 0.0
    %263 = vmatpush1.msra.mxu0 0.0
    %264 = vmatprep.subr.mxu0 0.0
    %265 = vmatpush1.msra.mxu0 0.0
    %266 = vmatprep.subr.mxu0 0.0
    %267 = vmatpush1.msra.mxu0 0.0
    %268 = vmatprep.subr.mxu0 0.0
    %269 = vmatpush1.msra.mxu0 0.0
    %270 = vmatprep.subr.mxu0 0.0
    %271 = vmatpush1.msra.mxu0 0.0
    %272 = vmatprep.subr.mxu0 0.0
    %273 = vmatpush1.msra.mxu0 0.0
    %274 = vmatprep.subr.mxu0 0.0
    %275 = vmatpush1.msra.mxu0 0.0
    %276 = vmatprep.subr.mxu0 0.0
    %277 = vmatpush1.msra.mxu0 0.0
    %278 = vmatprep.subr.mxu0 0.0
    %279 = vmatpush1.msra.mxu0 0.0
    %280 = vmatprep.subr.mxu0 0.0
    %281 = vmatpush1.msra.mxu0 0.0
    %282 = vmatprep.subr.mxu0 0.0
    %283 = vmatpush1.msra.mxu0 0.0
    %284 = vmatprep.subr.mxu0 0.0
    %285 = vmatpush1.msra.mxu0 0.0
    %286 = vmatprep.subr.mxu0 0.0
    %287 = vmatpush1.msra.mxu0 0.0
    %288 = vmatprep.subr.mxu0 0.0
    %289 = vmatpush1.msra.mxu0 0.0
    %290 = vmatprep.subr.mxu0 0.0
    %291 = vmatpush1.msra.mxu0 0.0
    %292 = vmatprep.subr.mxu0 0.0
    %293 = vmatpush1.msra.mxu0 %v171
    %294 = vmatprep.subr.mxu0 0.0
    %295 = vmatpush2.msra.mxu0 0.0
    %296 = vmatprep.subr.mxu0 0.0
    %297 = vmatpush2.msra.mxu0 0.0
    %298 = vmatprep.subr.mxu0 0.0
    %299 = vmatpush2.msra.mxu0 0.0
    %300 = vmatprep.subr.mxu0 0.0
    %301 = vmatpush2.msra.mxu0 0.0
    %302 = vmatprep.subr.mxu0 0.0
    %303 = vmatpush2.msra.mxu0 0.0
    %304 = vmatprep.subr.mxu0 0.0
    %305 = vmatpush2.msra.mxu0 0.0
    %306 = vmatprep.subr.mxu0 0.0
    %307 = vmatpush2.msra.mxu0 0.0
    %308 = vmatprep.subr.mxu0 0.0
    %309 = vmatpush2.msra.mxu0 0.0
    %310 = vmatprep.subr.mxu0 0.0
    %311 = vmatpush2.msra.mxu0 0.0
    %312 = vmatprep.subr.mxu0 0.0
    %313 = vmatpush2.msra.mxu0 0.0
    %314 = vmatprep.subr.mxu0 0.0
    %315 = vmatpush2.msra.mxu0 0.0
    %316 = vmatprep.subr.mxu0 0.0
    %317 = vmatpush2.msra.mxu0 0.0
    %318 = vmatprep.subr.mxu0 0.0
    %319 = vmatpush2.msra.mxu0 0.0
    %320 = vmatprep.subr.mxu0 0.0
    %321 = vmatpush2.msra.mxu0 0.0
    %322 = vmatprep.subr.mxu0 0.0
    %323 = vmatpush2.msra.mxu0 0.0
    %324 = vmatprep.subr.mxu0 0.0
    %325 = vmatpush2.msra.mxu0 0.0
    %326 = vmatprep.mubr.f32.mxu0 0.0
    %327 = vmatmul.mubr.f32.gmra.mxu0 %v260
    %v328 = vpop.f32.mrf.mxu0
    %v329 = vadd.f32 0.0, %v328
    %v330 = vpop.f32.mrf.mxu0
    %331 = vdwg.mxu0
    %v333 = vsel %vm258, %v88, 0
    %335 = vmatprep.subr.mxu0 0.0
    %336 = vmatpush1.msra.mxu0 0.0
    %337 = vmatprep.subr.mxu0 0.0
    %338 = vmatpush1.msra.mxu0 0.0
    %339 = vmatprep.subr.mxu0 0.0
    %340 = vmatpush1.msra.mxu0 0.0
    %341 = vmatprep.subr.mxu0 0.0
    %342 = vmatpush1.msra.mxu0 0.0
    %343 = vmatprep.subr.mxu0 0.0
    %344 = vmatpush1.msra.mxu0 0.0
    %345 = vmatprep.subr.mxu0 0.0
    %346 = vmatpush1.msra.mxu0 0.0
    %347 = vmatprep.subr.mxu0 0.0
    %348 = vmatpush1.msra.mxu0 0.0
    %349 = vmatprep.subr.mxu0 0.0
    %350 = vmatpush1.msra.mxu0 0.0
    %351 = vmatprep.subr.mxu0 0.0
    %352 = vmatpush1.msra.mxu0 0.0
    %353 = vmatprep.subr.mxu0 0.0
    %354 = vmatpush1.msra.mxu0 0.0
    %355 = vmatprep.subr.mxu0 0.0
    %356 = vmatpush1.msra.mxu0 0.0
    %357 = vmatprep.subr.mxu0 0.0
    %358 = vmatpush1.msra.mxu0 0.0
    %359 = vmatprep.subr.mxu0 0.0
    %360 = vmatpush1.msra.mxu0 0.0
    %361 = vmatprep.subr.mxu0 0.0
    %362 = vmatpush1.msra.mxu0 0.0
    %363 = vmatprep.subr.mxu0 0.0
    %364 = vmatpush1.msra.mxu0 0.0
    %365 = vmatprep.subr.mxu0 0.0
    %366 = vmatpush1.msra.mxu0 %v176
    %367 = vmatprep.subr.mxu0 0.0
    %368 = vmatpush2.msra.mxu0 0.0
    %369 = vmatprep.subr.mxu0 0.0
    %370 = vmatpush2.msra.mxu0 0.0
    %371 = vmatprep.subr.mxu0 0.0
    %372 = vmatpush2.msra.mxu0 0.0
    %373 = vmatprep.subr.mxu0 0.0
    %374 = vmatpush2.msra.mxu0 0.0
    %375 = vmatprep.subr.mxu0 0.0
    %376 = vmatpush2.msra.mxu0 0.0
    %377 = vmatprep.subr.mxu0 0.0
    %378 = vmatpush2.msra.mxu0 0.0
    %379 = vmatprep.subr.mxu0 0.0
    %380 = vmatpush2.msra.mxu0 0.0
    %381 = vmatprep.subr.mxu0 0.0
    %382 = vmatpush2.msra.mxu0 0.0
    %383 = vmatprep.subr.mxu0 0.0
    %384 = vmatpush2.msra.mxu0 0.0
    %385 = vmatprep.subr.mxu0 0.0
    %386 = vmatpush2.msra.mxu0 0.0
    %387 = vmatprep.subr.mxu0 0.0
    %388 = vmatpush2.msra.mxu0 0.0
    %389 = vmatprep.subr.mxu0 0.0
    %390 = vmatpush2.msra.mxu0 0.0
    %391 = vmatprep.subr.mxu0 0.0
    %392 = vmatpush2.msra.mxu0 0.0
    %393 = vmatprep.subr.mxu0 0.0
    %394 = vmatpush2.msra.mxu0 0.0
    %395 = vmatprep.subr.mxu0 0.0
    %396 = vmatpush2.msra.mxu0 0.0
    %397 = vmatprep.subr.mxu0 0.0
    %398 = vmatpush2.msra.mxu0 0.0
    %399 = vmatprep.mubr.f32.mxu0 0.0
    %400 = vmatmul.mubr.f32.gmra.mxu0 %v333
    %v401 = vpop.f32.mrf.mxu0
    %v402 = vadd.f32 0.0, %v401
    %v403 = vpop.f32.mrf.mxu0
    %404 = vdwg.mxu0
    %v405 = vlaneseq
    %v406 = vshrl.u32 %v405, 7
    %v407 = vsub.s32 2, %v406
    %v408 = vrot.slane %v85, %v407
    %v409 = vadd.f32 %v329, %v408
    %v410 = vadd.f32 %v402, %v408
    %v412 = vsel %vm258, %v89, 0
    %414 = vmatprep.subr.mxu0 0.0
    %415 = vmatpush1.msra.mxu0 0.0
    %416 = vmatprep.subr.mxu0 0.0
    %417 = vmatpush1.msra.mxu0 0.0
    %418 = vmatprep.subr.mxu0 0.0
    %419 = vmatpush1.msra.mxu0 0.0
    %420 = vmatprep.subr.mxu0 0.0
    %421 = vmatpush1.msra.mxu0 0.0
    %422 = vmatprep.subr.mxu0 0.0
    %423 = vmatpush1.msra.mxu0 0.0
    %424 = vmatprep.subr.mxu0 0.0
    %425 = vmatpush1.msra.mxu0 0.0
    %426 = vmatprep.subr.mxu0 0.0
    %427 = vmatpush1.msra.mxu0 0.0
    %428 = vmatprep.subr.mxu0 0.0
    %429 = vmatpush1.msra.mxu0 0.0
    %430 = vmatprep.subr.mxu0 0.0
    %431 = vmatpush1.msra.mxu0 0.0
    %432 = vmatprep.subr.mxu0 0.0
    %433 = vmatpush1.msra.mxu0 0.0
    %434 = vmatprep.subr.mxu0 0.0
    %435 = vmatpush1.msra.mxu0 0.0
    %436 = vmatprep.subr.mxu0 0.0
    %437 = vmatpush1.msra.mxu0 0.0
    %438 = vmatprep.subr.mxu0 0.0
    %439 = vmatpush1.msra.mxu0 0.0
    %440 = vmatprep.subr.mxu0 0.0
    %441 = vmatpush1.msra.mxu0 0.0
    %442 = vmatprep.subr.mxu0 0.0
    %443 = vmatpush1.msra.mxu0 0.0
    %444 = vmatprep.subr.mxu0 0.0
    %445 = vmatpush1.msra.mxu0 %v250
    %446 = vmatprep.subr.mxu0 0.0
    %447 = vmatpush2.msra.mxu0 0.0
    %448 = vmatprep.subr.mxu0 0.0
    %449 = vmatpush2.msra.mxu0 0.0
    %450 = vmatprep.subr.mxu0 0.0
    %451 = vmatpush2.msra.mxu0 0.0
    %452 = vmatprep.subr.mxu0 0.0
    %453 = vmatpush2.msra.mxu0 0.0
    %454 = vmatprep.subr.mxu0 0.0
    %455 = vmatpush2.msra.mxu0 0.0
    %456 = vmatprep.subr.mxu0 0.0
    %457 = vmatpush2.msra.mxu0 0.0
    %458 = vmatprep.subr.mxu0 0.0
    %459 = vmatpush2.msra.mxu0 0.0
    %460 = vmatprep.subr.mxu0 0.0
    %461 = vmatpush2.msra.mxu0 0.0
    %462 = vmatprep.subr.mxu0 0.0
    %463 = vmatpush2.msra.mxu0 0.0
    %464 = vmatprep.subr.mxu0 0.0
    %465 = vmatpush2.msra.mxu0 0.0
    %466 = vmatprep.subr.mxu0 0.0
    %467 = vmatpush2.msra.mxu0 0.0
    %468 = vmatprep.subr.mxu0 0.0
    %469 = vmatpush2.msra.mxu0 0.0
    %470 = vmatprep.subr.mxu0 0.0
    %471 = vmatpush2.msra.mxu0 0.0
    %472 = vmatprep.subr.mxu0 0.0
    %473 = vmatpush2.msra.mxu0 0.0
    %474 = vmatprep.subr.mxu0 0.0
    %475 = vmatpush2.msra.mxu0 0.0
    %476 = vmatprep.subr.mxu0 0.0
    %477 = vmatpush2.msra.mxu0 0.0
    %478 = vmatprep.mubr.f32.mxu0 0.0
    %479 = vmatmul.mubr.f32.gmra.mxu0 %v412
    %v480 = vpop.f32.mrf.mxu0
    %v481 = vadd.f32 0.0, %v480
    %v482 = vpop.f32.mrf.mxu0
    %483 = vdwg.mxu0
    %v485 = vsel %vm258, %v90, 0
    %487 = vmatprep.subr.mxu0 0.0
    %488 = vmatpush1.msra.mxu0 0.0
    %489 = vmatprep.subr.mxu0 0.0
    %490 = vmatpush1.msra.mxu0 0.0
    %491 = vmatprep.subr.mxu0 0.0
    %492 = vmatpush1.msra.mxu0 0.0
    %493 = vmatprep.subr.mxu0 0.0
    %494 = vmatpush1.msra.mxu0 0.0
    %495 = vmatprep.subr.mxu0 0.0
    %496 = vmatpush1.msra.mxu0 0.0
    %497 = vmatprep.subr.mxu0 0.0
    %498 = vmatpush1.msra.mxu0 0.0
    %499 = vmatprep.subr.mxu0 0.0
    %500 = vmatpush1.msra.mxu0 0.0
    %501 = vmatprep.subr.mxu0 0.0
    %502 = vmatpush1.msra.mxu0 0.0
    %503 = vmatprep.subr.mxu0 0.0
    %504 = vmatpush1.msra.mxu0 0.0
    %505 = vmatprep.subr.mxu0 0.0
    %506 = vmatpush1.msra.mxu0 0.0
    %507 = vmatprep.subr.mxu0 0.0
    %508 = vmatpush1.msra.mxu0 0.0
    %509 = vmatprep.subr.mxu0 0.0
    %510 = vmatpush1.msra.mxu0 0.0
    %511 = vmatprep.subr.mxu0 0.0
    %512 = vmatpush1.msra.mxu0 0.0
    %513 = vmatprep.subr.mxu0 0.0
    %514 = vmatpush1.msra.mxu0 0.0
    %515 = vmatprep.subr.mxu0 0.0
    %516 = vmatpush1.msra.mxu0 0.0
    %517 = vmatprep.subr.mxu0 0.0
    %518 = vmatpush1.msra.mxu0 %v255
    %519 = vmatprep.subr.mxu0 0.0
    %520 = vmatpush2.msra.mxu0 0.0
    %521 = vmatprep.subr.mxu0 0.0
    %522 = vmatpush2.msra.mxu0 0.0
    %523 = vmatprep.subr.mxu0 0.0
    %524 = vmatpush2.msra.mxu0 0.0
    %525 = vmatprep.subr.mxu0 0.0
    %526 = vmatpush2.msra.mxu0 0.0
    %527 = vmatprep.subr.mxu0 0.0
    %528 = vmatpush2.msra.mxu0 0.0
    %529 = vmatprep.subr.mxu0 0.0
    %530 = vmatpush2.msra.mxu0 0.0
    %531 = vmatprep.subr.mxu0 0.0
    %532 = vmatpush2.msra.mxu0 0.0
    %533 = vmatprep.subr.mxu0 0.0
    %534 = vmatpush2.msra.mxu0 0.0
    %535 = vmatprep.subr.mxu0 0.0
    %536 = vmatpush2.msra.mxu0 0.0
    %537 = vmatprep.subr.mxu0 0.0
    %538 = vmatpush2.msra.mxu0 0.0
    %539 = vmatprep.subr.mxu0 0.0
    %540 = vmatpush2.msra.mxu0 0.0
    %541 = vmatprep.subr.mxu0 0.0
    %542 = vmatpush2.msra.mxu0 0.0
    %543 = vmatprep.subr.mxu0 0.0
    %544 = vmatpush2.msra.mxu0 0.0
    %545 = vmatprep.subr.mxu0 0.0
    %546 = vmatpush2.msra.mxu0 0.0
    %547 = vmatprep.subr.mxu0 0.0
    %548 = vmatpush2.msra.mxu0 0.0
    %549 = vmatprep.subr.mxu0 0.0
    %550 = vmatpush2.msra.mxu0 0.0
    %551 = vmatprep.mubr.f32.mxu0 0.0
    %552 = vmatmul.mubr.f32.gmra.mxu0 %v485
    %v553 = vpop.f32.mrf.mxu0
    %v554 = vadd.f32 0.0, %v553
    %v555 = vpop.f32.mrf.mxu0
    %556 = vdwg.mxu0
    %v557 = vlaneseq
    %v558 = vshrl.u32 %v557, 7
    %v559 = vsub.s32 3, %v558
    %v560 = vrot.slane %v85, %v559
    %v561 = vadd.f32 %v481, %v560
    %v562 = vadd.f32 %v554, %v560
    %v564 = vsel %vm97, %v561, 0
    %v567 = vsel %vm97, %v562, 0
    %569 = vmatprep.subr.mxu0 0.0
    %570 = vmatpush1.msra.mxu0 0.0
    %571 = vmatprep.subr.mxu0 0.0
    %572 = vmatpush1.msra.mxu0 0.0
    %573 = vmatprep.subr.mxu0 0.0
    %574 = vmatpush1.msra.mxu0 0.0
    %575 = vmatprep.subr.mxu0 0.0
    %576 = vmatpush1.msra.mxu0 0.0
    %577 = vmatprep.subr.mxu0 0.0
    %578 = vmatpush1.msra.mxu0 0.0
    %579 = vmatprep.subr.mxu0 0.0
    %580 = vmatpush1.msra.mxu0 0.0
    %581 = vmatprep.subr.mxu0 0.0
    %582 = vmatpush1.msra.mxu0 0.0
    %583 = vmatprep.subr.mxu0 0.0
    %584 = vmatpush1.msra.mxu0 0.0
    %585 = vmatprep.subr.mxu0 0.0
    %586 = vmatpush1.msra.mxu0 0.0
    %587 = vmatprep.subr.mxu0 0.0
    %588 = vmatpush1.msra.mxu0 0.0
    %589 = vmatprep.subr.mxu0 0.0
    %590 = vmatpush1.msra.mxu0 0.0
    %591 = vmatprep.subr.mxu0 0.0
    %592 = vmatpush1.msra.mxu0 0.0
    %593 = vmatprep.subr.mxu0 0.0
    %594 = vmatpush1.msra.mxu0 %v80
    %595 = vmatprep.subr.mxu0 0.0
    %596 = vmatpush1.msra.mxu0 %v79
    %597 = vmatprep.subr.mxu0 0.0
    %598 = vmatpush1.msra.mxu0 %v78
    %599 = vmatprep.subr.mxu0 0.0
    %600 = vmatpush1.msra.mxu0 %v77
    %601 = vmatprep.subr.mxu0 0.0
    %602 = vmatpush2.msra.mxu0 0.0
    %603 = vmatprep.subr.mxu0 0.0
    %604 = vmatpush2.msra.mxu0 0.0
    %605 = vmatprep.subr.mxu0 0.0
    %606 = vmatpush2.msra.mxu0 0.0
    %607 = vmatprep.subr.mxu0 0.0
    %608 = vmatpush2.msra.mxu0 0.0
    %609 = vmatprep.subr.mxu0 0.0
    %610 = vmatpush2.msra.mxu0 0.0
    %611 = vmatprep.subr.mxu0 0.0
    %612 = vmatpush2.msra.mxu0 0.0
    %613 = vmatprep.subr.mxu0 0.0
    %614 = vmatpush2.msra.mxu0 0.0
    %615 = vmatprep.subr.mxu0 0.0
    %616 = vmatpush2.msra.mxu0 0.0
    %617 = vmatprep.subr.mxu0 0.0
    %618 = vmatpush2.msra.mxu0 0.0
    %619 = vmatprep.subr.mxu0 0.0
    %620 = vmatpush2.msra.mxu0 0.0
    %621 = vmatprep.subr.mxu0 0.0
    %622 = vmatpush2.msra.mxu0 0.0
    %623 = vmatprep.subr.mxu0 0.0
    %624 = vmatpush2.msra.mxu0 0.0
    %625 = vmatprep.subr.mxu0 0.0
    %626 = vmatpush2.msra.mxu0 0.0
    %627 = vmatprep.subr.mxu0 0.0
    %628 = vmatpush2.msra.mxu0 0.0
    %629 = vmatprep.subr.mxu0 0.0
    %630 = vmatpush2.msra.mxu0 0.0
    %631 = vmatprep.subr.mxu0 0.0
    %632 = vmatpush2.msra.mxu0 0.0
    %633 = vmatprep.mubr.f32.mxu0 0.0
    %634 = vmatmul.mubr.f32.gmra.mxu0 %v564
    %v635 = vpop.f32.mrf.mxu0
    %v636 = vadd.f32 0.0, %v635
    %v637 = vpop.f32.mrf.mxu0
    %638 = vmatprep.mubr.f32.mxu0 0.0
    %639 = vmatmul.mubr.f32.gmra.mxu0 %v567
    %v640 = vpop.f32.mrf.mxu0
    %v641 = vadd.f32 0.0, %v640
    %v642 = vpop.f32.mrf.mxu0
    %643 = vdwg.mxu0
    %v645 = vsel %vm97, %v409, 0
    %v648 = vsel %vm97, %v410, 0
    %650 = vmatprep.subr.mxu0 0.0
    %651 = vmatpush1.msra.mxu0 0.0
    %652 = vmatprep.subr.mxu0 0.0
    %653 = vmatpush1.msra.mxu0 0.0
    %654 = vmatprep.subr.mxu0 0.0
    %655 = vmatpush1.msra.mxu0 0.0
    %656 = vmatprep.subr.mxu0 0.0
    %657 = vmatpush1.msra.mxu0 0.0
    %658 = vmatprep.subr.mxu0 0.0
    %659 = vmatpush1.msra.mxu0 0.0
    %660 = vmatprep.subr.mxu0 0.0
    %661 = vmatpush1.msra.mxu0 0.0
    %662 = vmatprep.subr.mxu0 0.0
    %663 = vmatpush1.msra.mxu0 0.0
    %664 = vmatprep.subr.mxu0 0.0
    %665 = vmatpush1.msra.mxu0 0.0
    %666 = vmatprep.subr.mxu0 0.0
    %667 = vmatpush1.msra.mxu0 0.0
    %668 = vmatprep.subr.mxu0 0.0
    %669 = vmatpush1.msra.mxu0 0.0
    %670 = vmatprep.subr.mxu0 0.0
    %671 = vmatpush1.msra.mxu0 0.0
    %672 = vmatprep.subr.mxu0 0.0
    %673 = vmatpush1.msra.mxu0 0.0
    %674 = vmatprep.subr.mxu0 0.0
    %675 = vmatpush1.msra.mxu0 %v76
    %676 = vmatprep.subr.mxu0 0.0
    %677 = vmatpush1.msra.mxu0 %v75
    %678 = vmatprep.subr.mxu0 0.0
    %679 = vmatpush1.msra.mxu0 %v74
    %680 = vmatprep.subr.mxu0 0.0
    %681 = vmatpush1.msra.mxu0 %v73
    %682 = vmatprep.subr.mxu0 0.0
    %683 = vmatpush2.msra.mxu0 0.0
    %684 = vmatprep.subr.mxu0 0.0
    %685 = vmatpush2.msra.mxu0 0.0
    %686 = vmatprep.subr.mxu0 0.0
    %687 = vmatpush2.msra.mxu0 0.0
    %688 = vmatprep.subr.mxu0 0.0
    %689 = vmatpush2.msra.mxu0 0.0
    %690 = vmatprep.subr.mxu0 0.0
    %691 = vmatpush2.msra.mxu0 0.0
    %692 = vmatprep.subr.mxu0 0.0
    %693 = vmatpush2.msra.mxu0 0.0
    %694 = vmatprep.subr.mxu0 0.0
    %695 = vmatpush2.msra.mxu0 0.0
    %696 = vmatprep.subr.mxu0 0.0
    %697 = vmatpush2.msra.mxu0 0.0
    %698 = vmatprep.subr.mxu0 0.0
    %699 = vmatpush2.msra.mxu0 0.0
    %700 = vmatprep.subr.mxu0 0.0
    %701 = vmatpush2.msra.mxu0 0.0
    %702 = vmatprep.subr.mxu0 0.0
    %703 = vmatpush2.msra.mxu0 0.0
    %704 = vmatprep.subr.mxu0 0.0
    %705 = vmatpush2.msra.mxu0 0.0
    %706 = vmatprep.subr.mxu0 0.0
    %707 = vmatpush2.msra.mxu0 0.0
    %708 = vmatprep.subr.mxu0 0.0
    %709 = vmatpush2.msra.mxu0 0.0
    %710 = vmatprep.subr.mxu0 0.0
    %711 = vmatpush2.msra.mxu0 0.0
    %712 = vmatprep.subr.mxu0 0.0
    %713 = vmatpush2.msra.mxu0 0.0
    %714 = vmatprep.mubr.f32.mxu0 0.0
    %715 = vmatmul.mubr.f32.gmra.mxu0 %v645
    %v716 = vpop.f32.mrf.mxu0
    %v717 = vadd.f32 %v636, %v716
    %v718 = vpop.f32.mrf.mxu0
    %719 = vmatprep.mubr.f32.mxu0 0.0
    %720 = vmatmul.mubr.f32.gmra.mxu0 %v648
    %v721 = vpop.f32.mrf.mxu0
    %v722 = vadd.f32 %v641, %v721
    %v723 = vpop.f32.mrf.mxu0
    %724 = vdwg.mxu0
    %v725 = vlaneseq
    %v726 = vshrl.u32 %v725, 7
    %v727 = vsub.s32 0, %v726
    %v728 = vrot.slane %v86, %v727
    %v729 = vadd.f32 %v717, %v728
    %v730 = vadd.f32 %v722, %v728
    %v731 = vlaneseq
    %v732 = vshrl.u32 %v731, 7
    %v733 = vsub.s32 1, %v732
    %v734 = vrot.slane %v86, %v733
    %735 = vmatprep.subr.mxu0 0.0
    %736 = vmatpush1.msra.mxu0 0.0
    %737 = vmatprep.subr.mxu0 0.0
    %738 = vmatpush1.msra.mxu0 0.0
    %739 = vmatprep.subr.mxu0 0.0
    %740 = vmatpush1.msra.mxu0 0.0
    %741 = vmatprep.subr.mxu0 0.0
    %742 = vmatpush1.msra.mxu0 0.0
    %743 = vmatprep.subr.mxu0 0.0
    %744 = vmatpush1.msra.mxu0 0.0
    %745 = vmatprep.subr.mxu0 0.0
    %746 = vmatpush1.msra.mxu0 0.0
    %747 = vmatprep.subr.mxu0 0.0
    %748 = vmatpush1.msra.mxu0 0.0
    %749 = vmatprep.subr.mxu0 0.0
    %750 = vmatpush1.msra.mxu0 0.0
    %751 = vmatprep.subr.mxu0 0.0
    %752 = vmatpush1.msra.mxu0 0.0
    %753 = vmatprep.subr.mxu0 0.0
    %754 = vmatpush1.msra.mxu0 0.0
    %755 = vmatprep.subr.mxu0 0.0
    %756 = vmatpush1.msra.mxu0 0.0
    %757 = vmatprep.subr.mxu0 0.0
    %758 = vmatpush1.msra.mxu0 0.0
    %759 = vmatprep.subr.mxu0 0.0
    %760 = vmatpush1.msra.mxu0 %v84
    %761 = vmatprep.subr.mxu0 0.0
    %762 = vmatpush1.msra.mxu0 %v83
    %763 = vmatprep.subr.mxu0 0.0
    %764 = vmatpush1.msra.mxu0 %v82
    %765 = vmatprep.subr.mxu0 0.0
    %766 = vmatpush1.msra.mxu0 %v81
    %767 = vmatprep.subr.mxu0 0.0
    %768 = vmatpush2.msra.mxu0 0.0
    %769 = vmatprep.subr.mxu0 0.0
    %770 = vmatpush2.msra.mxu0 0.0
    %771 = vmatprep.subr.mxu0 0.0
    %772 = vmatpush2.msra.mxu0 0.0
    %773 = vmatprep.subr.mxu0 0.0
    %774 = vmatpush2.msra.mxu0 0.0
    %775 = vmatprep.subr.mxu0 0.0
    %776 = vmatpush2.msra.mxu0 0.0
    %777 = vmatprep.subr.mxu0 0.0
    %778 = vmatpush2.msra.mxu0 0.0
    %779 = vmatprep.subr.mxu0 0.0
    %780 = vmatpush2.msra.mxu0 0.0
    %781 = vmatprep.subr.mxu0 0.0
    %782 = vmatpush2.msra.mxu0 0.0
    %783 = vmatprep.subr.mxu0 0.0
    %784 = vmatpush2.msra.mxu0 0.0
    %785 = vmatprep.subr.mxu0 0.0
    %786 = vmatpush2.msra.mxu0 0.0
    %787 = vmatprep.subr.mxu0 0.0
    %788 = vmatpush2.msra.mxu0 0.0
    %789 = vmatprep.subr.mxu0 0.0
    %790 = vmatpush2.msra.mxu0 0.0
    %791 = vmatprep.subr.mxu0 0.0
    %792 = vmatpush2.msra.mxu0 0.0
    %793 = vmatprep.subr.mxu0 0.0
    %794 = vmatpush2.msra.mxu0 0.0
    %795 = vmatprep.subr.mxu0 0.0
    %796 = vmatpush2.msra.mxu0 0.0
    %797 = vmatprep.subr.mxu0 0.0
    %798 = vmatpush2.msra.mxu0 0.0
    %799 = vmatprep.mubr.f32.mxu0 0.0
    %800 = vmatmul.mubr.f32.gmra.mxu0 %v99
    %v801 = vpop.f32.mrf.mxu0
    %v802 = vadd.f32 %v734, %v801
    %v803 = vpop.f32.mrf.mxu0
    %804 = vmatprep.mubr.f32.mxu0 0.0
    %805 = vmatmul.mubr.f32.gmra.mxu0 %v102
    %v806 = vpop.f32.mrf.mxu0
    %v807 = vadd.f32 %v734, %v806
    %v808 = vpop.f32.mrf.mxu0
    %809 = vdwg.mxu0
    %v810 = vadd.f32 %v729, %v802
    %v811 = vadd.f32 %v730, %v807
    %v812 = vxor.u32 %v810, 2147483648
    %v813 = vxor.u32 %v811, 2147483648
    %v814 = vmul.f32 %v812, 1.442695
    %v815 = vpow.pop %v814
    %v816 = vmul.f32 %v813, 1.442695
    %v817 = vpow.pop %v816
    %v818 = vadd.f32 %v815, 1.0
    %v819 = vadd.f32 %v817, 1.0
    %v820 = vrcp.pop %v818
    %v821 = vmul.f32 1.0, %v820
    %v822 = vrcp.pop %v819
    %v823 = vmul.f32 1.0, %v822
    %826 = vrot.lane.b32.xlu0 %v802, 64
    %v827 = vpop.permute.xlu0 %826
    %828 = vrot.lane.b32.xlu0 %v807, 64
    %v829 = vpop.permute.xlu0 %828
    %v832 = vmul.f32 %v821, %v827
    %v833 = vmul.f32 %v823, %v829
    %836 = vrot.lane.b32.xlu0 %v832, 64
    %v837 = vpop.permute.xlu0 %836
    %838 = vrot.lane.b32.xlu0 %v833, 64
    %v839 = vpop.permute.xlu0 %838
    %v842 = vadd.f32 %v729, %v837
    %v843 = vadd.f32 %v730, %v839
    %v844 = vtanh.pop %v842
    %v845 = vtanh.pop %v843
    %848 = vrot.lane.b32.xlu0 %v844, 64
    %v849 = vpop.permute.xlu0 %848
    %850 = vrot.lane.b32.xlu0 %v845, 64
    %v851 = vpop.permute.xlu0 %850
    %v854 = vsub.f32 %v91, %v849
    %v855 = vsub.f32 %v92, %v851
    %858 = vrot.lane.b32.xlu0 %v854, 32
    %v859 = vpop.permute.xlu0 %858
    %860 = vrot.lane.b32.xlu0 %v855, 32
    %v861 = vpop.permute.xlu0 %860
    %v864 = vmul.f32 %v821, %v859
    %v865 = vmul.f32 %v823, %v861
    %868 = vrot.lane.b32.xlu0 %v864, 32
    %v869 = vpop.permute.xlu0 %868
    %870 = vrot.lane.b32.xlu0 %v865, 32
    %v871 = vpop.permute.xlu0 %870
    %v874 = vadd.f32 %v844, %v869
    %v875 = vadd.f32 %v845, %v871
    %v876 = vld [vmem:[%s3] sm:$0xff]
    %v877 = vld [vmem:[%s3 + $0x8] sm:$0xff]
    %880 = vrot.lane.b32.xlu0 %v874, 64
    %v881 = vpop.permute.xlu0 %880
    %882 = vrot.lane.b32.xlu0 %v875, 64
    %v883 = vpop.permute.xlu0 %882
    %vm886 = vcmask 130048
    %v888 = vsel %vm886, %v876, 0
    %v891 = vsel %vm886, %v877, 0
    %893 = vmatprep.subr.mxu0 0.0
    %894 = vmatpush1.msra.mxu0 0.0
    %895 = vmatprep.subr.mxu0 0.0
    %896 = vmatpush1.msra.mxu0 0.0
    %897 = vmatprep.subr.mxu0 0.0
    %898 = vmatpush1.msra.mxu0 0.0
    %899 = vmatprep.subr.mxu0 0.0
    %900 = vmatpush1.msra.mxu0 0.0
    %901 = vmatprep.subr.mxu0 0.0
    %902 = vmatpush1.msra.mxu0 0.0
    %903 = vmatprep.subr.mxu0 0.0
    %904 = vmatpush1.msra.mxu0 0.0
    %905 = vmatprep.subr.mxu0 0.0
    %906 = vmatpush1.msra.mxu0 0.0
    %907 = vmatprep.subr.mxu0 0.0
    %908 = vmatpush1.msra.mxu0 0.0
    %909 = vmatprep.subr.mxu0 0.0
    %910 = vmatpush1.msra.mxu0 0.0
    %911 = vmatprep.subr.mxu0 0.0
    %912 = vmatpush1.msra.mxu0 0.0
    %913 = vmatprep.subr.mxu0 0.0
    %914 = vmatpush1.msra.mxu0 0.0
    %915 = vmatprep.subr.mxu0 0.0
    %916 = vmatpush1.msra.mxu0 0.0
    %917 = vmatprep.subr.mxu0 0.0
    %918 = vmatpush1.msra.mxu0 0.0
    %919 = vmatprep.subr.mxu0 0.0
    %920 = vmatpush1.msra.mxu0 0.0
    %921 = vmatprep.subr.mxu0 0.0
    %922 = vmatpush1.msra.mxu0 %v883
    %923 = vmatprep.subr.mxu0 0.0
    %924 = vmatpush1.msra.mxu0 %v881
    %925 = vmatprep.subr.mxu0 0.0
    %926 = vmatpush2.msra.mxu0 0.0
    %927 = vmatprep.subr.mxu0 0.0
    %928 = vmatpush2.msra.mxu0 0.0
    %929 = vmatprep.subr.mxu0 0.0
    %930 = vmatpush2.msra.mxu0 0.0
    %931 = vmatprep.subr.mxu0 0.0
    %932 = vmatpush2.msra.mxu0 0.0
    %933 = vmatprep.subr.mxu0 0.0
    %934 = vmatpush2.msra.mxu0 0.0
    %935 = vmatprep.subr.mxu0 0.0
    %936 = vmatpush2.msra.mxu0 0.0
    %937 = vmatprep.subr.mxu0 0.0
    %938 = vmatpush2.msra.mxu0 0.0
    %939 = vmatprep.subr.mxu0 0.0
    %940 = vmatpush2.msra.mxu0 0.0
    %941 = vmatprep.subr.mxu0 0.0
    %942 = vmatpush2.msra.mxu0 0.0
    %943 = vmatprep.subr.mxu0 0.0
    %944 = vmatpush2.msra.mxu0 0.0
    %945 = vmatprep.subr.mxu0 0.0
    %946 = vmatpush2.msra.mxu0 0.0
    %947 = vmatprep.subr.mxu0 0.0
    %948 = vmatpush2.msra.mxu0 0.0
    %949 = vmatprep.subr.mxu0 0.0
    %950 = vmatpush2.msra.mxu0 0.0
    %951 = vmatprep.subr.mxu0 0.0
    %952 = vmatpush2.msra.mxu0 0.0
    %953 = vmatprep.subr.mxu0 0.0
    %954 = vmatpush2.msra.mxu0 0.0
    %955 = vmatprep.subr.mxu0 0.0
    %956 = vmatpush2.msra.mxu0 0.0
    %957 = vmatprep.mubr.f32.mxu0 0.0
    %958 = vmatmul.mubr.f32.gmra.mxu0 %v888
    %v959 = vpop.f32.mrf.mxu0
    %v960 = vadd.f32 0.0, %v959
    %v961 = vpop.f32.mrf.mxu0
    %962 = vmatprep.mubr.f32.mxu0 0.0
    %963 = vmatmul.mubr.f32.gmra.mxu0 %v891
    %v964 = vpop.f32.mrf.mxu0
    %v965 = vadd.f32 0.0, %v964
    %v966 = vpop.f32.mrf.mxu0
    %967 = vdwg.mxu0
    %968 = vst.msk [vmem:[#allocation2] sm:$0xff] %vm97, %v960
    %969 = vst.msk [vmem:[#allocation2 + $0x8] sm:$0xff] %vm97, %v965
    %v970 = vld [vmem:[%s4] sm:$0x3]
    %v972 = vsel %vm886, %v970, 0
    %974 = vmatprep.subr.mxu0 0.0
    %975 = vmatpush1.msra.mxu0 0.0
    %976 = vmatprep.subr.mxu0 0.0
    %977 = vmatpush1.msra.mxu0 0.0
    %978 = vmatprep.subr.mxu0 0.0
    %979 = vmatpush1.msra.mxu0 0.0
    %980 = vmatprep.subr.mxu0 0.0
    %981 = vmatpush1.msra.mxu0 0.0
    %982 = vmatprep.subr.mxu0 0.0
    %983 = vmatpush1.msra.mxu0 0.0
    %984 = vmatprep.subr.mxu0 0.0
    %985 = vmatpush1.msra.mxu0 0.0
    %986 = vmatprep.subr.mxu0 0.0
    %987 = vmatpush1.msra.mxu0 0.0
    %988 = vmatprep.subr.mxu0 0.0
    %989 = vmatpush1.msra.mxu0 0.0
    %990 = vmatprep.subr.mxu0 0.0
    %991 = vmatpush1.msra.mxu0 0.0
    %992 = vmatprep.subr.mxu0 0.0
    %993 = vmatpush1.msra.mxu0 0.0
    %994 = vmatprep.subr.mxu0 0.0
    %995 = vmatpush1.msra.mxu0 0.0
    %996 = vmatprep.subr.mxu0 0.0
    %997 = vmatpush1.msra.mxu0 0.0
    %998 = vmatprep.subr.mxu0 0.0
    %999 = vmatpush1.msra.mxu0 0.0
    %1000 = vmatprep.subr.mxu0 0.0
    %1001 = vmatpush1.msra.mxu0 0.0
    %1002 = vmatprep.subr.mxu0 0.0
    %1003 = vmatpush1.msra.mxu0 %v965
    %1004 = vmatprep.subr.mxu0 0.0
    %1005 = vmatpush1.msra.mxu0 %v960
    %1006 = vmatprep.subr.mxu0 0.0
    %1007 = vmatpush2.msra.mxu0 0.0
    %1008 = vmatprep.subr.mxu0 0.0
    %1009 = vmatpush2.msra.mxu0 0.0
    %1010 = vmatprep.subr.mxu0 0.0
    %1011 = vmatpush2.msra.mxu0 0.0
    %1012 = vmatprep.subr.mxu0 0.0
    %1013 = vmatpush2.msra.mxu0 0.0
    %1014 = vmatprep.subr.mxu0 0.0
    %1015 = vmatpush2.msra.mxu0 0.0
    %1016 = vmatprep.subr.mxu0 0.0
    %1017 = vmatpush2.msra.mxu0 0.0
    %1018 = vmatprep.subr.mxu0 0.0
    %1019 = vmatpush2.msra.mxu0 0.0
    %1020 = vmatprep.subr.mxu0 0.0
    %1021 = vmatpush2.msra.mxu0 0.0
    %1022 = vmatprep.subr.mxu0 0.0
    %1023 = vmatpush2.msra.mxu0 0.0
    %1024 = vmatprep.subr.mxu0 0.0
    %1025 = vmatpush2.msra.mxu0 0.0
    %1026 = vmatprep.subr.mxu0 0.0
    %1027 = vmatpush2.msra.mxu0 0.0
    %1028 = vmatprep.subr.mxu0 0.0
    %1029 = vmatpush2.msra.mxu0 0.0
    %1030 = vmatprep.subr.mxu0 0.0
    %1031 = vmatpush2.msra.mxu0 0.0
    %1032 = vmatprep.subr.mxu0 0.0
    %1033 = vmatpush2.msra.mxu0 0.0
    %1034 = vmatprep.subr.mxu0 0.0
    %1035 = vmatpush2.msra.mxu0 0.0
    %1036 = vmatprep.subr.mxu0 0.0
    %1037 = vmatpush2.msra.mxu0 0.0
    %1038 = vmatprep.mubr.f32.mxu0 0.0
    %1039 = vmatmul.mubr.f32.gmra.mxu0 %v972
    %v1040 = vpop.f32.mrf.mxu0
    %v1041 = vadd.f32 0.0, %v1040
    %v1042 = vpop.f32.mrf.mxu0
    %1043 = vdwg.mxu0
    %v1044 = vlaneseq
    %v1045 = vshrl.u32 %v1044, 7
    %v1046 = vsub.s32 4, %v1045
    %v1047 = vrot.slane %v85, %v1046
    %v1049 = vsel %vm97, %v1041, 0
    %1051 = vmatprep.subr.mxu0 0.0
    %1052 = vmatpush1.msra.mxu0 0.0
    %1053 = vmatprep.subr.mxu0 0.0
    %1054 = vmatpush1.msra.mxu0 0.0
    %1055 = vmatprep.subr.mxu0 0.0
    %1056 = vmatpush1.msra.mxu0 0.0
    %1057 = vmatprep.subr.mxu0 0.0
    %1058 = vmatpush1.msra.mxu0 0.0
    %1059 = vmatprep.subr.mxu0 0.0
    %1060 = vmatpush1.msra.mxu0 0.0
    %1061 = vmatprep.subr.mxu0 0.0
    %1062 = vmatpush1.msra.mxu0 0.0
    %1063 = vmatprep.subr.mxu0 0.0
    %1064 = vmatpush1.msra.mxu0 0.0
    %1065 = vmatprep.subr.mxu0 0.0
    %1066 = vmatpush1.msra.mxu0 0.0
    %1067 = vmatprep.subr.mxu0 0.0
    %1068 = vmatpush1.msra.mxu0 0.0
    %1069 = vmatprep.subr.mxu0 0.0
    %1070 = vmatpush1.msra.mxu0 0.0
    %1071 = vmatprep.subr.mxu0 0.0
    %1072 = vmatpush1.msra.mxu0 0.0
    %1073 = vmatprep.subr.mxu0 0.0
    %1074 = vmatpush1.msra.mxu0 0.0
    %1075 = vmatprep.subr.mxu0 0.0
    %1076 = vmatpush1.msra.mxu0 %v56
    %1077 = vmatprep.subr.mxu0 0.0
    %1078 = vmatpush1.msra.mxu0 %v55
    %1079 = vmatprep.subr.mxu0 0.0
    %1080 = vmatpush1.msra.mxu0 %v54
    %1081 = vmatprep.subr.mxu0 0.0
    %1082 = vmatpush1.msra.mxu0 %v53
    %1083 = vmatprep.subr.mxu0 0.0
    %1084 = vmatpush2.msra.mxu0 0.0
    %1085 = vmatprep.subr.mxu0 0.0
    %1086 = vmatpush2.msra.mxu0 0.0
    %1087 = vmatprep.subr.mxu0 0.0
    %1088 = vmatpush2.msra.mxu0 0.0
    %1089 = vmatprep.subr.mxu0 0.0
    %1090 = vmatpush2.msra.mxu0 0.0
    %1091 = vmatprep.subr.mxu0 0.0
    %1092 = vmatpush2.msra.mxu0 0.0
    %1093 = vmatprep.subr.mxu0 0.0
    %1094 = vmatpush2.msra.mxu0 0.0
    %1095 = vmatprep.subr.mxu0 0.0
    %1096 = vmatpush2.msra.mxu0 0.0
    %1097 = vmatprep.subr.mxu0 0.0
    %1098 = vmatpush2.msra.mxu0 0.0
    %1099 = vmatprep.subr.mxu0 0.0
    %1100 = vmatpush2.msra.mxu0 0.0
    %1101 = vmatprep.subr.mxu0 0.0
    %1102 = vmatpush2.msra.mxu0 0.0
    %1103 = vmatprep.subr.mxu0 0.0
    %1104 = vmatpush2.msra.mxu0 0.0
    %1105 = vmatprep.subr.mxu0 0.0
    %1106 = vmatpush2.msra.mxu0 0.0
    %1107 = vmatprep.subr.mxu0 0.0
    %1108 = vmatpush2.msra.mxu0 0.0
    %1109 = vmatprep.subr.mxu0 0.0
    %1110 = vmatpush2.msra.mxu0 0.0
    %1111 = vmatprep.subr.mxu0 0.0
    %1112 = vmatpush2.msra.mxu0 0.0
    %1113 = vmatprep.subr.mxu0 0.0
    %1114 = vmatpush2.msra.mxu0 0.0
    %1115 = vmatprep.mubr.f32.mxu0 0.0
    %1116 = vmatmul.mubr.f32.gmra.mxu0 %v1049
    %v1117 = vpop.f32.mrf.mxu0
    %v1118 = vadd.f32 %v1047, %v1117
    %v1119 = vpop.f32.mrf.mxu0
    %1120 = vdwg.mxu0
    %v1121 = vlaneseq
    %v1122 = vshrl.u32 %v1121, 7
    %v1123 = vsub.s32 5, %v1122
    %v1124 = vrot.slane %v85, %v1123
    %v1126 = vsel %vm97, %v960, 0
    %v1129 = vsel %vm97, %v965, 0
    %1131 = vmatprep.subr.mxu0 0.0
    %1132 = vmatpush1.msra.mxu0 0.0
    %1133 = vmatprep.subr.mxu0 0.0
    %1134 = vmatpush1.msra.mxu0 0.0
    %1135 = vmatprep.subr.mxu0 0.0
    %1136 = vmatpush1.msra.mxu0 0.0
    %1137 = vmatprep.subr.mxu0 0.0
    %1138 = vmatpush1.msra.mxu0 0.0
    %1139 = vmatprep.subr.mxu0 0.0
    %1140 = vmatpush1.msra.mxu0 0.0
    %1141 = vmatprep.subr.mxu0 0.0
    %1142 = vmatpush1.msra.mxu0 0.0
    %1143 = vmatprep.subr.mxu0 0.0
    %1144 = vmatpush1.msra.mxu0 0.0
    %1145 = vmatprep.subr.mxu0 0.0
    %1146 = vmatpush1.msra.mxu0 0.0
    %1147 = vmatprep.subr.mxu0 0.0
    %1148 = vmatpush1.msra.mxu0 0.0
    %1149 = vmatprep.subr.mxu0 0.0
    %1150 = vmatpush1.msra.mxu0 0.0
    %1151 = vmatprep.subr.mxu0 0.0
    %1152 = vmatpush1.msra.mxu0 0.0
    %1153 = vmatprep.subr.mxu0 0.0
    %1154 = vmatpush1.msra.mxu0 0.0
    %1155 = vmatprep.subr.mxu0 0.0
    %1156 = vmatpush1.msra.mxu0 %v60
    %1157 = vmatprep.subr.mxu0 0.0
    %1158 = vmatpush1.msra.mxu0 %v59
    %1159 = vmatprep.subr.mxu0 0.0
    %1160 = vmatpush1.msra.mxu0 %v58
    %1161 = vmatprep.subr.mxu0 0.0
    %1162 = vmatpush1.msra.mxu0 %v57
    %1163 = vmatprep.subr.mxu0 0.0
    %1164 = vmatpush2.msra.mxu0 0.0
    %1165 = vmatprep.subr.mxu0 0.0
    %1166 = vmatpush2.msra.mxu0 0.0
    %1167 = vmatprep.subr.mxu0 0.0
    %1168 = vmatpush2.msra.mxu0 0.0
    %1169 = vmatprep.subr.mxu0 0.0
    %1170 = vmatpush2.msra.mxu0 0.0
    %1171 = vmatprep.subr.mxu0 0.0
    %1172 = vmatpush2.msra.mxu0 0.0
    %1173 = vmatprep.subr.mxu0 0.0
    %1174 = vmatpush2.msra.mxu0 0.0
    %1175 = vmatprep.subr.mxu0 0.0
    %1176 = vmatpush2.msra.mxu0 0.0
    %1177 = vmatprep.subr.mxu0 0.0
    %1178 = vmatpush2.msra.mxu0 0.0
    %1179 = vmatprep.subr.mxu0 0.0
    %1180 = vmatpush2.msra.mxu0 0.0
    %1181 = vmatprep.subr.mxu0 0.0
    %1182 = vmatpush2.msra.mxu0 0.0
    %1183 = vmatprep.subr.mxu0 0.0
    %1184 = vmatpush2.msra.mxu0 0.0
    %1185 = vmatprep.subr.mxu0 0.0
    %1186 = vmatpush2.msra.mxu0 0.0
    %1187 = vmatprep.subr.mxu0 0.0
    %1188 = vmatpush2.msra.mxu0 0.0
    %1189 = vmatprep.subr.mxu0 0.0
    %1190 = vmatpush2.msra.mxu0 0.0
    %1191 = vmatprep.subr.mxu0 0.0
    %1192 = vmatpush2.msra.mxu0 0.0
    %1193 = vmatprep.subr.mxu0 0.0
    %1194 = vmatpush2.msra.mxu0 0.0
    %1195 = vmatprep.mubr.f32.mxu0 0.0
    %1196 = vmatmul.mubr.f32.gmra.mxu0 %v1126
    %v1197 = vpop.f32.mrf.mxu0
    %v1198 = vadd.f32 %v1124, %v1197
    %v1199 = vpop.f32.mrf.mxu0
    %1200 = vmatprep.mubr.f32.mxu0 0.0
    %1201 = vmatmul.mubr.f32.gmra.mxu0 %v1129
    %v1202 = vpop.f32.mrf.mxu0
    %v1203 = vadd.f32 %v1124, %v1202
    %v1204 = vpop.f32.mrf.mxu0
    %1205 = vdwg.mxu0
    %v1206 = vld [vmem:[%s6] sm:$0xff]
    %v1207 = vld [vmem:[%s6 + $0x8] sm:$0xff]
    %vm1208 = vcmask 15360
    %v1210 = vsel %vm1208, %v1206, 0
    %v1213 = vsel %vm1208, %v1207, 0
    %vm1215 = vcmask 1041408
    %v1217 = vsel %vm1215, %v1118, 0
    %1219 = vmatprep.subr.mxu0 0.0
    %1220 = vmatpush1.msra.mxu0 0.0
    %1221 = vmatprep.subr.mxu0 0.0
    %1222 = vmatpush1.msra.mxu0 0.0
    %1223 = vmatprep.subr.mxu0 0.0
    %1224 = vmatpush1.msra.mxu0 0.0
    %1225 = vmatprep.subr.mxu0 0.0
    %1226 = vmatpush1.msra.mxu0 0.0
    %1227 = vmatprep.subr.mxu0 0.0
    %1228 = vmatpush1.msra.mxu0 0.0
    %1229 = vmatprep.subr.mxu0 0.0
    %1230 = vmatpush1.msra.mxu0 0.0
    %1231 = vmatprep.subr.mxu0 0.0
    %1232 = vmatpush1.msra.mxu0 0.0
    %1233 = vmatprep.subr.mxu0 0.0
    %1234 = vmatpush1.msra.mxu0 0.0
    %1235 = vmatprep.subr.mxu0 0.0
    %1236 = vmatpush1.msra.mxu0 0.0
    %1237 = vmatprep.subr.mxu0 0.0
    %1238 = vmatpush1.msra.mxu0 0.0
    %1239 = vmatprep.subr.mxu0 0.0
    %1240 = vmatpush1.msra.mxu0 0.0
    %1241 = vmatprep.subr.mxu0 0.0
    %1242 = vmatpush1.msra.mxu0 0.0
    %1243 = vmatprep.subr.mxu0 0.0
    %1244 = vmatpush1.msra.mxu0 0.0
    %1245 = vmatprep.subr.mxu0 0.0
    %1246 = vmatpush1.msra.mxu0 0.0
    %1247 = vmatprep.subr.mxu0 0.0
    %1248 = vmatpush1.msra.mxu0 0.0
    %1249 = vmatprep.subr.mxu0 0.0
    %1250 = vmatpush1.msra.mxu0 %v1217
    %1251 = vmatprep.subr.mxu0 0.0
    %1252 = vmatpush2.msra.mxu0 0.0
    %1253 = vmatprep.subr.mxu0 0.0
    %1254 = vmatpush2.msra.mxu0 0.0
    %1255 = vmatprep.subr.mxu0 0.0
    %1256 = vmatpush2.msra.mxu0 0.0
    %1257 = vmatprep.subr.mxu0 0.0
    %1258 = vmatpush2.msra.mxu0 0.0
    %1259 = vmatprep.subr.mxu0 0.0
    %1260 = vmatpush2.msra.mxu0 0.0
    %1261 = vmatprep.subr.mxu0 0.0
    %1262 = vmatpush2.msra.mxu0 0.0
    %1263 = vmatprep.subr.mxu0 0.0
    %1264 = vmatpush2.msra.mxu0 0.0
    %1265 = vmatprep.subr.mxu0 0.0
    %1266 = vmatpush2.msra.mxu0 0.0
    %1267 = vmatprep.subr.mxu0 0.0
    %1268 = vmatpush2.msra.mxu0 0.0
    %1269 = vmatprep.subr.mxu0 0.0
    %1270 = vmatpush2.msra.mxu0 0.0
    %1271 = vmatprep.subr.mxu0 0.0
    %1272 = vmatpush2.msra.mxu0 0.0
    %1273 = vmatprep.subr.mxu0 0.0
    %1274 = vmatpush2.msra.mxu0 0.0
    %1275 = vmatprep.subr.mxu0 0.0
    %1276 = vmatpush2.msra.mxu0 0.0
    %1277 = vmatprep.subr.mxu0 0.0
    %1278 = vmatpush2.msra.mxu0 0.0
    %1279 = vmatprep.subr.mxu0 0.0
    %1280 = vmatpush2.msra.mxu0 0.0
    %1281 = vmatprep.subr.mxu0 0.0
    %1282 = vmatpush2.msra.mxu0 0.0
    %1283 = vmatprep.mubr.f32.mxu0 0.0
    %1284 = vmatmul.mubr.f32.gmra.mxu0 %v1210
    %v1285 = vpop.f32.mrf.mxu0
    %v1286 = vadd.f32 %v1198, %v1285
    %v1287 = vpop.f32.mrf.mxu0
    %1288 = vmatprep.mubr.f32.mxu0 0.0
    %1289 = vmatmul.mubr.f32.gmra.mxu0 %v1213
    %v1290 = vpop.f32.mrf.mxu0
    %v1291 = vadd.f32 %v1203, %v1290
    %v1292 = vpop.f32.mrf.mxu0
    %1293 = vdwg.mxu0
    %v1294 = vxor.u32 %v1286, 2147483648
    %v1295 = vxor.u32 %v1291, 2147483648
    %v1296 = vmul.f32 %v1294, 1.442695
    %v1297 = vpow.pop %v1296
    %v1298 = vmul.f32 %v1295, 1.442695
    %v1299 = vpow.pop %v1298
    %v1300 = vadd.f32 %v1297, 1.0
    %v1301 = vadd.f32 %v1299, 1.0
    %v1302 = vrcp.pop %v1300
    %v1303 = vmul.f32 1.0, %v1302
    %v1304 = vrcp.pop %v1301
    %v1305 = vmul.f32 1.0, %v1304
    %v1306 = vlaneseq
    %v1307 = vshrl.u32 %v1306, 7
    %v1308 = vsub.s32 6, %v1307
    %v1309 = vrot.slane %v85, %v1308
    %v1311 = vsel %vm97, %v1303, 0
    %v1314 = vsel %vm97, %v1305, 0
    %1316 = vmatprep.subr.mxu0 0.0
    %1317 = vmatpush1.msra.mxu0 0.0
    %1318 = vmatprep.subr.mxu0 0.0
    %1319 = vmatpush1.msra.mxu0 0.0
    %1320 = vmatprep.subr.mxu0 0.0
    %1321 = vmatpush1.msra.mxu0 0.0
    %1322 = vmatprep.subr.mxu0 0.0
    %1323 = vmatpush1.msra.mxu0 0.0
    %1324 = vmatprep.subr.mxu0 0.0
    %1325 = vmatpush1.msra.mxu0 0.0
    %1326 = vmatprep.subr.mxu0 0.0
    %1327 = vmatpush1.msra.mxu0 0.0
    %1328 = vmatprep.subr.mxu0 0.0
    %1329 = vmatpush1.msra.mxu0 0.0
    %1330 = vmatprep.subr.mxu0 0.0
    %1331 = vmatpush1.msra.mxu0 0.0
    %1332 = vmatprep.subr.mxu0 0.0
    %1333 = vmatpush1.msra.mxu0 0.0
    %1334 = vmatprep.subr.mxu0 0.0
    %1335 = vmatpush1.msra.mxu0 0.0
    %1336 = vmatprep.subr.mxu0 0.0
    %1337 = vmatpush1.msra.mxu0 0.0
    %1338 = vmatprep.subr.mxu0 0.0
    %1339 = vmatpush1.msra.mxu0 0.0
    %1340 = vmatprep.subr.mxu0 0.0
    %1341 = vmatpush1.msra.mxu0 %v64
    %1342 = vmatprep.subr.mxu0 0.0
    %1343 = vmatpush1.msra.mxu0 %v63
    %1344 = vmatprep.subr.mxu0 0.0
    %1345 = vmatpush1.msra.mxu0 %v62
    %1346 = vmatprep.subr.mxu0 0.0
    %1347 = vmatpush1.msra.mxu0 %v61
    %1348 = vmatprep.subr.mxu0 0.0
    %1349 = vmatpush2.msra.mxu0 0.0
    %1350 = vmatprep.subr.mxu0 0.0
    %1351 = vmatpush2.msra.mxu0 0.0
    %1352 = vmatprep.subr.mxu0 0.0
    %1353 = vmatpush2.msra.mxu0 0.0
    %1354 = vmatprep.subr.mxu0 0.0
    %1355 = vmatpush2.msra.mxu0 0.0
    %1356 = vmatprep.subr.mxu0 0.0
    %1357 = vmatpush2.msra.mxu0 0.0
    %1358 = vmatprep.subr.mxu0 0.0
    %1359 = vmatpush2.msra.mxu0 0.0
    %1360 = vmatprep.subr.mxu0 0.0
    %1361 = vmatpush2.msra.mxu0 0.0
    %1362 = vmatprep.subr.mxu0 0.0
    %1363 = vmatpush2.msra.mxu0 0.0
    %1364 = vmatprep.subr.mxu0 0.0
    %1365 = vmatpush2.msra.mxu0 0.0
    %1366 = vmatprep.subr.mxu0 0.0
    %1367 = vmatpush2.msra.mxu0 0.0
    %1368 = vmatprep.subr.mxu0 0.0
    %1369 = vmatpush2.msra.mxu0 0.0
    %1370 = vmatprep.subr.mxu0 0.0
    %1371 = vmatpush2.msra.mxu0 0.0
    %1372 = vmatprep.subr.mxu0 0.0
    %1373 = vmatpush2.msra.mxu0 0.0
    %1374 = vmatprep.subr.mxu0 0.0
    %1375 = vmatpush2.msra.mxu0 0.0
    %1376 = vmatprep.subr.mxu0 0.0
    %1377 = vmatpush2.msra.mxu0 0.0
    %1378 = vmatprep.subr.mxu0 0.0
    %1379 = vmatpush2.msra.mxu0 0.0
    %1380 = vmatprep.mubr.f32.mxu0 0.0
    %1381 = vmatmul.mubr.f32.gmra.mxu0 %v1311
    %v1382 = vpop.f32.mrf.mxu0
    %v1383 = vadd.f32 %v1309, %v1382
    %v1384 = vpop.f32.mrf.mxu0
    %1385 = vmatprep.mubr.f32.mxu0 0.0
    %1386 = vmatmul.mubr.f32.gmra.mxu0 %v1314
    %v1387 = vpop.f32.mrf.mxu0
    %v1388 = vadd.f32 %v1309, %v1387
    %v1389 = vpop.f32.mrf.mxu0
    %1390 = vdwg.mxu0
    %v1391 = vld [vmem:[%s7] sm:$0x3]
    %v1392 = vmul.f32 %v1383, %v960
    %v1393 = vmul.f32 %v1388, %v965
    %v1394 = vld [vmem:[%s5] sm:$0xff]
    %v1395 = vld [vmem:[%s5 + $0x8] sm:$0xff]
    %1397 = vset.pattern.permute.xlu0 0
    %1398 = vperm.xlu0 %1397, %v1394
    %v1399 = vpop.permute.xlu0 %1398
    %1402 = vset.pattern.permute.xlu0 0
    %1403 = vperm.xlu0 %1402, %v1395
    %v1404 = vpop.permute.xlu0 %1403
    %v1406 = vmul.f32 %v1392, %v1399
    %v1407 = vmul.f32 %v1393, %v1404
    %v1409 = vsel %vm886, %v1391, 0
    %1411 = vmatprep.subr.mxu0 0.0
    %1412 = vmatpush1.msra.mxu0 0.0
    %1413 = vmatprep.subr.mxu0 0.0
    %1414 = vmatpush1.msra.mxu0 0.0
    %1415 = vmatprep.subr.mxu0 0.0
    %1416 = vmatpush1.msra.mxu0 0.0
    %1417 = vmatprep.subr.mxu0 0.0
    %1418 = vmatpush1.msra.mxu0 0.0
    %1419 = vmatprep.subr.mxu0 0.0
    %1420 = vmatpush1.msra.mxu0 0.0
    %1421 = vmatprep.subr.mxu0 0.0
    %1422 = vmatpush1.msra.mxu0 0.0
    %1423 = vmatprep.subr.mxu0 0.0
    %1424 = vmatpush1.msra.mxu0 0.0
    %1425 = vmatprep.subr.mxu0 0.0
    %1426 = vmatpush1.msra.mxu0 0.0
    %1427 = vmatprep.subr.mxu0 0.0
    %1428 = vmatpush1.msra.mxu0 0.0
    %1429 = vmatprep.subr.mxu0 0.0
    %1430 = vmatpush1.msra.mxu0 0.0
    %1431 = vmatprep.subr.mxu0 0.0
    %1432 = vmatpush1.msra.mxu0 0.0
    %1433 = vmatprep.subr.mxu0 0.0
    %1434 = vmatpush1.msra.mxu0 0.0
    %1435 = vmatprep.subr.mxu0 0.0
    %1436 = vmatpush1.msra.mxu0 0.0
    %1437 = vmatprep.subr.mxu0 0.0
    %1438 = vmatpush1.msra.mxu0 0.0
    %1439 = vmatprep.subr.mxu0 0.0
    %1440 = vmatpush1.msra.mxu0 %v1407
    %1441 = vmatprep.subr.mxu0 0.0
    %1442 = vmatpush1.msra.mxu0 %v1406
    %1443 = vmatprep.subr.mxu0 0.0
    %1444 = vmatpush2.msra.mxu0 0.0
    %1445 = vmatprep.subr.mxu0 0.0
    %1446 = vmatpush2.msra.mxu0 0.0
    %1447 = vmatprep.subr.mxu0 0.0
    %1448 = vmatpush2.msra.mxu0 0.0
    %1449 = vmatprep.subr.mxu0 0.0
    %1450 = vmatpush2.msra.mxu0 0.0
    %1451 = vmatprep.subr.mxu0 0.0
    %1452 = vmatpush2.msra.mxu0 0.0
    %1453 = vmatprep.subr.mxu0 0.0
    %1454 = vmatpush2.msra.mxu0 0.0
    %1455 = vmatprep.subr.mxu0 0.0
    %1456 = vmatpush2.msra.mxu0 0.0
    %1457 = vmatprep.subr.mxu0 0.0
    %1458 = vmatpush2.msra.mxu0 0.0
    %1459 = vmatprep.subr.mxu0 0.0
    %1460 = vmatpush2.msra.mxu0 0.0
    %1461 = vmatprep.subr.mxu0 0.0
    %1462 = vmatpush2.msra.mxu0 0.0
    %1463 = vmatprep.subr.mxu0 0.0
    %1464 = vmatpush2.msra.mxu0 0.0
    %1465 = vmatprep.subr.mxu0 0.0
    %1466 = vmatpush2.msra.mxu0 0.0
    %1467 = vmatprep.subr.mxu0 0.0
    %1468 = vmatpush2.msra.mxu0 0.0
    %1469 = vmatprep.subr.mxu0 0.0
    %1470 = vmatpush2.msra.mxu0 0.0
    %1471 = vmatprep.subr.mxu0 0.0
    %1472 = vmatpush2.msra.mxu0 0.0
    %1473 = vmatprep.subr.mxu0 0.0
    %1474 = vmatpush2.msra.mxu0 0.0
    %1475 = vmatprep.mubr.f32.mxu0 0.0
    %1476 = vmatmul.mubr.f32.gmra.mxu0 %v1409
    %v1477 = vpop.f32.mrf.mxu0
    %v1478 = vadd.f32 0.0, %v1477
    %v1479 = vpop.f32.mrf.mxu0
    %1480 = vdwg.mxu0
    %1481 = vmatprep.subr.mxu0 0.0
    %1482 = vmatpush1.msra.mxu0 0.0
    %1483 = vmatprep.subr.mxu0 0.0
    %1484 = vmatpush1.msra.mxu0 0.0
    %1485 = vmatprep.subr.mxu0 0.0
    %1486 = vmatpush1.msra.mxu0 0.0
    %1487 = vmatprep.subr.mxu0 0.0
    %1488 = vmatpush1.msra.mxu0 0.0
    %1489 = vmatprep.subr.mxu0 0.0
    %1490 = vmatpush1.msra.mxu0 0.0
    %1491 = vmatprep.subr.mxu0 0.0
    %1492 = vmatpush1.msra.mxu0 0.0
    %1493 = vmatprep.subr.mxu0 0.0
    %1494 = vmatpush1.msra.mxu0 0.0
    %1495 = vmatprep.subr.mxu0 0.0
    %1496 = vmatpush1.msra.mxu0 0.0
    %1497 = vmatprep.subr.mxu0 0.0
    %1498 = vmatpush1.msra.mxu0 0.0
    %1499 = vmatprep.subr.mxu0 0.0
    %1500 = vmatpush1.msra.mxu0 0.0
    %1501 = vmatprep.subr.mxu0 0.0
    %1502 = vmatpush1.msra.mxu0 0.0
    %1503 = vmatprep.subr.mxu0 0.0
    %1504 = vmatpush1.msra.mxu0 0.0
    %1505 = vmatprep.subr.mxu0 0.0
    %1506 = vmatpush1.msra.mxu0 %v72
    %1507 = vmatprep.subr.mxu0 0.0
    %1508 = vmatpush1.msra.mxu0 %v71
    %1509 = vmatprep.subr.mxu0 0.0
    %1510 = vmatpush1.msra.mxu0 %v70
    %1511 = vmatprep.subr.mxu0 0.0
    %1512 = vmatpush1.msra.mxu0 %v69
    %1513 = vmatprep.subr.mxu0 0.0
    %1514 = vmatpush2.msra.mxu0 0.0
    %1515 = vmatprep.subr.mxu0 0.0
    %1516 = vmatpush2.msra.mxu0 0.0
    %1517 = vmatprep.subr.mxu0 0.0
    %1518 = vmatpush2.msra.mxu0 0.0
    %1519 = vmatprep.subr.mxu0 0.0
    %1520 = vmatpush2.msra.mxu0 0.0
    %1521 = vmatprep.subr.mxu0 0.0
    %1522 = vmatpush2.msra.mxu0 0.0
    %1523 = vmatprep.subr.mxu0 0.0
    %1524 = vmatpush2.msra.mxu0 0.0
    %1525 = vmatprep.subr.mxu0 0.0
    %1526 = vmatpush2.msra.mxu0 0.0
    %1527 = vmatprep.subr.mxu0 0.0
    %1528 = vmatpush2.msra.mxu0 0.0
    %1529 = vmatprep.subr.mxu0 0.0
    %1530 = vmatpush2.msra.mxu0 0.0
    %1531 = vmatprep.subr.mxu0 0.0
    %1532 = vmatpush2.msra.mxu0 0.0
    %1533 = vmatprep.subr.mxu0 0.0
    %1534 = vmatpush2.msra.mxu0 0.0
    %1535 = vmatprep.subr.mxu0 0.0
    %1536 = vmatpush2.msra.mxu0 0.0
    %1537 = vmatprep.subr.mxu0 0.0
    %1538 = vmatpush2.msra.mxu0 0.0
    %1539 = vmatprep.subr.mxu0 0.0
    %1540 = vmatpush2.msra.mxu0 0.0
    %1541 = vmatprep.subr.mxu0 0.0
    %1542 = vmatpush2.msra.mxu0 0.0
    %1543 = vmatprep.subr.mxu0 0.0
    %1544 = vmatpush2.msra.mxu0 0.0
    %1545 = vmatprep.mubr.f32.mxu0 0.0
    %1546 = vmatmul.mubr.f32.gmra.mxu0 %v1049
    %v1547 = vpop.f32.mrf.mxu0
    %v1548 = vadd.f32 0.0, %v1547
    %v1549 = vpop.f32.mrf.mxu0
    %1550 = vdwg.mxu0
    %v1552 = vsel %vm97, %v1478, 0
    %1554 = vmatprep.subr.mxu0 0.0
    %1555 = vmatpush1.msra.mxu0 0.0
    %1556 = vmatprep.subr.mxu0 0.0
    %1557 = vmatpush1.msra.mxu0 0.0
    %1558 = vmatprep.subr.mxu0 0.0
    %1559 = vmatpush1.msra.mxu0 0.0
    %1560 = vmatprep.subr.mxu0 0.0
    %1561 = vmatpush1.msra.mxu0 0.0
    %1562 = vmatprep.subr.mxu0 0.0
    %1563 = vmatpush1.msra.mxu0 0.0
    %1564 = vmatprep.subr.mxu0 0.0
    %1565 = vmatpush1.msra.mxu0 0.0
    %1566 = vmatprep.subr.mxu0 0.0
    %1567 = vmatpush1.msra.mxu0 0.0
    %1568 = vmatprep.subr.mxu0 0.0
    %1569 = vmatpush1.msra.mxu0 0.0
    %1570 = vmatprep.subr.mxu0 0.0
    %1571 = vmatpush1.msra.mxu0 0.0
    %1572 = vmatprep.subr.mxu0 0.0
    %1573 = vmatpush1.msra.mxu0 0.0
    %1574 = vmatprep.subr.mxu0 0.0
    %1575 = vmatpush1.msra.mxu0 0.0
    %1576 = vmatprep.subr.mxu0 0.0
    %1577 = vmatpush1.msra.mxu0 0.0
    %1578 = vmatprep.subr.mxu0 0.0
    %1579 = vmatpush1.msra.mxu0 %v68
    %1580 = vmatprep.subr.mxu0 0.0
    %1581 = vmatpush1.msra.mxu0 %v67
    %1582 = vmatprep.subr.mxu0 0.0
    %1583 = vmatpush1.msra.mxu0 %v66
    %1584 = vmatprep.subr.mxu0 0.0
    %1585 = vmatpush1.msra.mxu0 %v65
    %1586 = vmatprep.subr.mxu0 0.0
    %1587 = vmatpush2.msra.mxu0 0.0
    %1588 = vmatprep.subr.mxu0 0.0
    %1589 = vmatpush2.msra.mxu0 0.0
    %1590 = vmatprep.subr.mxu0 0.0
    %1591 = vmatpush2.msra.mxu0 0.0
    %1592 = vmatprep.subr.mxu0 0.0
    %1593 = vmatpush2.msra.mxu0 0.0
    %1594 = vmatprep.subr.mxu0 0.0
    %1595 = vmatpush2.msra.mxu0 0.0
    %1596 = vmatprep.subr.mxu0 0.0
    %1597 = vmatpush2.msra.mxu0 0.0
    %1598 = vmatprep.subr.mxu0 0.0
    %1599 = vmatpush2.msra.mxu0 0.0
    %1600 = vmatprep.subr.mxu0 0.0
    %1601 = vmatpush2.msra.mxu0 0.0
    %1602 = vmatprep.subr.mxu0 0.0
    %1603 = vmatpush2.msra.mxu0 0.0
    %1604 = vmatprep.subr.mxu0 0.0
    %1605 = vmatpush2.msra.mxu0 0.0
    %1606 = vmatprep.subr.mxu0 0.0
    %1607 = vmatpush2.msra.mxu0 0.0
    %1608 = vmatprep.subr.mxu0 0.0
    %1609 = vmatpush2.msra.mxu0 0.0
    %1610 = vmatprep.subr.mxu0 0.0
    %1611 = vmatpush2.msra.mxu0 0.0
    %1612 = vmatprep.subr.mxu0 0.0
    %1613 = vmatpush2.msra.mxu0 0.0
    %1614 = vmatprep.subr.mxu0 0.0
    %1615 = vmatpush2.msra.mxu0 0.0
    %1616 = vmatprep.subr.mxu0 0.0
    %1617 = vmatpush2.msra.mxu0 0.0
    %1618 = vmatprep.mubr.f32.mxu0 0.0
    %1619 = vmatmul.mubr.f32.gmra.mxu0 %v1552
    %v1620 = vpop.f32.mrf.mxu0
    %v1621 = vadd.f32 %v1548, %v1620
    %v1622 = vpop.f32.mrf.mxu0
    %1623 = vdwg.mxu0
    %v1624 = vlaneseq
    %v1625 = vshrl.u32 %v1624, 7
    %v1626 = vsub.s32 7, %v1625
    %v1627 = vrot.slane %v85, %v1626
    %v1628 = vadd.f32 %v1621, %v1627
    %vm1629 = vcmask 254976
    %1630 = vst.msk [vmem:[#allocation4] sm:$0x3] %vm1629, %v1628
    // Predicated region
    $region50: #{tpu_custom_call.1} parent=1 // pred_check
      _
    $region51: #{tpu_custom_call.1} parent=1 // pred_check_branch
      %1632 = sbr.rel (0) target = $region53
    $region52: #{tpu_custom_call.1} parent=1 // pred_region
      %s1634 = ssub.s32 256, 256
      %1635 = vsyncadd [#allocation3], %s1634
      %s1636 = sshll.u32 [#allocation2], 4
      %s1637 = int_to_ptr.vmem [resolvable:$true] %s1636
      %1642 = dma.vmem_to_hbm [thread:$0]  %s1637, 256, %s12, [#allocation3], 128, 128, 8
    $region53: #{tpu_custom_call.1} parent=1 // pred_fallthru
      _
    // Predicated region
    $region54: #{tpu_custom_call.1} parent=1 // pred_check
      _
    $region55: #{tpu_custom_call.1} parent=1 // pred_check_branch
      %1644 = sbr.rel (0) target = $region57
    $region56: #{tpu_custom_call.1} parent=1 // pred_region
      %s1646 = ssub.s32 32, 32
      %1647 = vsyncadd [#allocation5], %s1646
      %s1649 = sshll.u32 [#allocation4], 4
      %s1650 = int_to_ptr.vmem [resolvable:$true] %s1649
      %1652 = dma.vmem_to_hbm [thread:$0]  %s1650, 32, %s13, [#allocation5]
    $region57: #{tpu_custom_call.1} parent=1 // pred_fallthru
      _
    // Predicated region
    $region58: #{tpu_custom_call.1} parent=1 // pred_check
      _
    $region59: #{tpu_custom_call.1} parent=1 // pred_check_branch
      %1654 = sbr.rel (0) target = $region61
    $region60: #{tpu_custom_call.1} parent=1 // pred_region
      %1655 = dma.done [#allocation3], 256
    $region61: #{tpu_custom_call.1} parent=1 // pred_fallthru
      _
    // Predicated region
    $region62: #{tpu_custom_call.1} parent=1 // pred_check
      _
    $region63: #{tpu_custom_call.1} parent=1 // pred_check_branch
      %1657 = sbr.rel (0) target = $region65
    $region64: #{tpu_custom_call.1} parent=1 // pred_region
      %1658 = dma.done [#allocation5], 32
    $region65: #{tpu_custom_call.1} parent=1 // pred_fallthru
      _
    %1659 = vsyncpa [#allocation3], 1
    %1660 = vsyncpa [#allocation5], 1

</llo_original>
